<compile_context>
chip_gen: v5e
topology: v5e:2x2
jax: 0.10.0
libtpu: 0.0.40
codegen_flags: <defaults>
</compile_context>

<pallas_src>
import functools

import jax
import jax.numpy as jnp
import numpy as np
from jax import lax
from jax.experimental import pallas as pl
from jax.experimental.pallas import tpu as pltpu


def _round_up(x, m):
    return ((x + m - 1) // m) * m


def _conv_kernel(x_ref, w_ref, b_ref, o_ref, *, KH, KW, Cin, Wp, LOUT):
    """Direct convolution of one batch element, spatial flattened on lanes.

    x_ref: (1, Cin, LIN)      flat (upsampled + reflection-padded) input rows
    w_ref: (Cout, KH*KW*Cin)  weights, tap-major
    b_ref: (Cout, 1)          bias
    o_ref: (1, Cout, LOUT)    stride-1 conv results on the padded-width flat grid
    """
    cout = o_ref.shape[1]
    acc = jnp.zeros((cout, LOUT), jnp.float32)
    # Fully static tap / channel loops -> 36 VPU broadcast-FMAs on a ~9-vreg acc.
    for kh in range(KH):
        for kw in range(KW):
            off = kh * Wp + kw                 # flat tap offset (stride-1 grid)
            base = (kh * KW + kw) * Cin
            for ci in range(Cin):
                row = x_ref[0, pl.ds(ci, 1), pl.ds(off, LOUT)]   # (1, LOUT)
                wcol = w_ref[:, pl.ds(base + ci, 1)]             # (Cout, 1)
                acc = acc + wcol * row                           # (Cout, LOUT) FMA
    o_ref[0] = (acc + b_ref[...]).astype(o_ref.dtype)


def upsample_conv_layer(x_nchw, weight_oihw, bias, *, kernel_size, stride=1,
                        upsample=None):
    """Forward pass equivalent to torchex UpsampleConvLayer.forward (NCHW in/out)."""
    N, Cin, H, W = x_nchw.shape
    Cout, Cin_w, KH, KW = weight_oihw.shape
    assert Cin_w == Cin

    x_in = x_nchw
    # Nearest-neighbor upsample (integer scale), same as F.interpolate(mode='nearest').
    if upsample:
        x_in = jnp.repeat(jnp.repeat(x_in, upsample, axis=2), upsample, axis=3)
    # ReflectionPad2d(kernel_size // 2) == jnp 'reflect' padding.
    pad = kernel_size // 2
    if pad > 0:
        x_in = jnp.pad(x_in, ((0, 0), (0, 0), (pad, pad), (pad, pad)),
                       mode="reflect")

    Hp, Wp = x_in.shape[2], x_in.shape[3]
    Hv, Wv = Hp - KH + 1, Wp - KW + 1          # stride-1 valid extents
    Wo = (Wp - KW) // stride + 1

    # Lane-dense flat lengths (multiples of 128 -> unmasked loads/stores).
    LOUT = _round_up(Hv * Wp, 128)
    LIN = _round_up((KH - 1) * Wp + (KW - 1) + LOUT, 128)

    x_flat = x_in.reshape(N, Cin, Hp * Wp)                       # free reshape
    x_flat = jnp.pad(x_flat, ((0, 0), (0, 0), (0, LIN - Hp * Wp)))

    # OIHW -> (Cout, KH*KW*Cin), tap-major (matches the kernel's loop order).
    w_flat = jnp.transpose(weight_oihw, (0, 2, 3, 1)).reshape(Cout, KH * KW * Cin)
    b_col = bias.reshape(Cout, 1)

    kernel = functools.partial(_conv_kernel, KH=KH, KW=KW, Cin=Cin, Wp=Wp,
                               LOUT=LOUT)

    out_flat = pl.pallas_call(
        kernel,
        out_shape=jax.ShapeDtypeStruct((N, Cout, LOUT), x_nchw.dtype),
        grid_spec=pltpu.PrefetchScalarGridSpec(
            num_scalar_prefetch=0,
            grid=(N,),
            in_specs=[
                pl.BlockSpec((1, Cin, LIN), lambda n: (n, 0, 0)),
                pl.BlockSpec((Cout, KH * KW * Cin), lambda n: (0, 0)),
                pl.BlockSpec((Cout, 1), lambda n: (0, 0)),
            ],
            out_specs=pl.BlockSpec((1, Cout, LOUT), lambda n: (n, 0, 0)),
        ),
        compiler_params=pltpu.CompilerParams(
            dimension_semantics=("parallel",)),
    )(x_flat, w_flat, b_col)

    # Valid stride-1 output (h, w) lives at flat position h*Wp + w with w < Wv;
    # reshape is free, the slice picks valid columns and applies the conv stride.
    out = out_flat[:, :, :Hv * Wp].reshape(N, Cout, Hv, Wp)
    out = out[:, :, ::stride, 0:Wv:stride]     # (N, Cout, Ho, Wo), NCHW
    return out


def _reference(x_nchw, weight_oihw, bias, *, kernel_size, stride, upsample):
    x_in = x_nchw
    if upsample:
        x_in = jnp.repeat(jnp.repeat(x_in, upsample, axis=2), upsample, axis=3)
    pad = kernel_size // 2
    if pad > 0:
        x_in = jnp.pad(x_in, ((0, 0), (0, 0), (pad, pad), (pad, pad)),
                       mode="reflect")
    out = lax.conv_general_dilated(
        x_in, weight_oihw, window_strides=(stride, stride), padding="VALID",
        dimension_numbers=("NCHW", "OIHW", "NCHW"))
    return out + bias[None, :, None, None]


if __name__ == "__main__":
    # Module config: UpsampleConvLayer(in_channels=4, out_channels=8,
    #                                  kernel_size=3, stride=1, upsample=2)
    in_channels, out_channels = 4, 8
    kernel_size, stride, upsample = 3, 1, 2

    key = jax.random.PRNGKey(0)
    kx, kw, kb = jax.random.split(key, 3)

    x = jax.random.normal(kx, (2, in_channels, 16, 16), dtype=jnp.float32)

    # Deterministic synthetic parameters (Conv2d-like uniform init).
    fan_in = in_channels * kernel_size * kernel_size
    bound = 1.0 / np.sqrt(fan_in)
    weight = jax.random.uniform(
        kw, (out_channels, in_channels, kernel_size, kernel_size),
        minval=-bound, maxval=bound, dtype=jnp.float32)
    bias = jax.random.uniform(kb, (out_channels,), minval=-bound, maxval=bound,
                              dtype=jnp.float32)

    out = upsample_conv_layer(x, weight, bias, kernel_size=kernel_size,
                              stride=stride, upsample=upsample)
    out = jax.block_until_ready(out)

    ref = _reference(x, weight, bias, kernel_size=kernel_size, stride=stride,
                     upsample=upsample)
    np.testing.assert_allclose(np.asarray(out), np.asarray(ref),
                               rtol=1e-4, atol=1e-4)
    assert out.shape == (2, out_channels, 16 * upsample, 16 * upsample)

    print("KERNEL_OK")
</pallas_src>

<mosaic_0001>
module attributes {stable_mosaic.version = 11 : i64} {
  func.func @_conv_kernel(%arg0: i32, %arg1: memref<1x4x1280xf32, #tpu.memory_space<vmem>>, %arg2: memref<8x36xf32, #tpu.memory_space<vmem>>, %arg3: memref<8x1xf32, #tpu.memory_space<vmem>>, %arg4: memref<1x8x1152xf32, #tpu.memory_space<vmem>>) attributes {dimension_semantics = [#tpu.dimension_semantics<parallel>], iteration_bounds = array<i64: 2>, scalar_prefetch = 0 : i64, scratch_operands = 0 : i64, tpu.core_type = #tpu.core_type<tc>, window_params = [{transform_indices = @transform_0, window_bounds = array<i64: 1, 4, 1280>}, {pipeline_mode = #tpu.pipeline_mode<synchronous>, transform_indices = @transform_1, window_bounds = array<i64: 8, 36>}, {pipeline_mode = #tpu.pipeline_mode<synchronous>, transform_indices = @transform_2, window_bounds = array<i64: 8, 1>}, {transform_indices = @transform_3, window_bounds = array<i64: 1, 8, 1152>}]} {
    %cst = arith.constant 0.000000e+00 : f32
    %0 = vector.broadcast %cst : f32 to vector<8x1152xf32>
    %c0 = arith.constant 0 : index
    %c0_0 = arith.constant 0 : index
    %c0_1 = arith.constant 0 : index
    %1 = vector.load %arg1[%c0, %c0_0, %c0_1] : memref<1x4x1280xf32, #tpu.memory_space<vmem>>, vector<1x1x1152xf32>
    %2 = vector.shape_cast %1 : vector<1x1x1152xf32> to vector<1x1152xf32>
    %c0_2 = arith.constant 0 : index
    %c0_3 = arith.constant 0 : index
    %3 = vector.load %arg2[%c0_2, %c0_3] : memref<8x36xf32, #tpu.memory_space<vmem>>, vector<8x1xf32>
    %4 = vector.broadcast %3 : vector<8x1xf32> to vector<8x1152xf32>
    %5 = vector.broadcast %2 : vector<1x1152xf32> to vector<8x1152xf32>
    %6 = arith.mulf %4, %5 : vector<8x1152xf32>
    %7 = arith.addf %0, %6 : vector<8x1152xf32>
    %c0_4 = arith.constant 0 : index
    %c1 = arith.constant 1 : index
    %c0_5 = arith.constant 0 : index
    %8 = vector.load %arg1[%c0_4, %c1, %c0_5] : memref<1x4x1280xf32, #tpu.memory_space<vmem>>, vector<1x1x1152xf32>
    %9 = vector.shape_cast %8 : vector<1x1x1152xf32> to vector<1x1152xf32>
    %c0_6 = arith.constant 0 : index
    %c1_7 = arith.constant 1 : index
    %10 = vector.load %arg2[%c0_6, %c1_7] : memref<8x36xf32, #tpu.memory_space<vmem>>, vector<8x1xf32>
    %11 = vector.broadcast %10 : vector<8x1xf32> to vector<8x1152xf32>
    %12 = vector.broadcast %9 : vector<1x1152xf32> to vector<8x1152xf32>
    %13 = arith.mulf %11, %12 : vector<8x1152xf32>
    %14 = arith.addf %7, %13 : vector<8x1152xf32>
    %c0_8 = arith.constant 0 : index
    %c2 = arith.constant 2 : index
    %c0_9 = arith.constant 0 : index
    %15 = vector.load %arg1[%c0_8, %c2, %c0_9] : memref<1x4x1280xf32, #tpu.memory_space<vmem>>, vector<1x1x1152xf32>
    %16 = vector.shape_cast %15 : vector<1x1x1152xf32> to vector<1x1152xf32>
    %c0_10 = arith.constant 0 : index
    %c2_11 = arith.constant 2 : index
    %17 = vector.load %arg2[%c0_10, %c2_11] : memref<8x36xf32, #tpu.memory_space<vmem>>, vector<8x1xf32>
    %18 = vector.broadcast %17 : vector<8x1xf32> to vector<8x1152xf32>
    %19 = vector.broadcast %16 : vector<1x1152xf32> to vector<8x1152xf32>
    %20 = arith.mulf %18, %19 : vector<8x1152xf32>
    %21 = arith.addf %14, %20 : vector<8x1152xf32>
    %c0_12 = arith.constant 0 : index
    %c3 = arith.constant 3 : index
    %c0_13 = arith.constant 0 : index
    %22 = vector.load %arg1[%c0_12, %c3, %c0_13] : memref<1x4x1280xf32, #tpu.memory_space<vmem>>, vector<1x1x1152xf32>
    %23 = vector.shape_cast %22 : vector<1x1x1152xf32> to vector<1x1152xf32>
    %c0_14 = arith.constant 0 : index
    %c3_15 = arith.constant 3 : index
    %24 = vector.load %arg2[%c0_14, %c3_15] : memref<8x36xf32, #tpu.memory_space<vmem>>, vector<8x1xf32>
    %25 = vector.broadcast %24 : vector<8x1xf32> to vector<8x1152xf32>
    %26 = vector.broadcast %23 : vector<1x1152xf32> to vector<8x1152xf32>
    %27 = arith.mulf %25, %26 : vector<8x1152xf32>
    %28 = arith.addf %21, %27 : vector<8x1152xf32>
    %c0_16 = arith.constant 0 : index
    %c0_17 = arith.constant 0 : index
    %c1_18 = arith.constant 1 : index
    %29 = vector.load %arg1[%c0_16, %c0_17, %c1_18] : memref<1x4x1280xf32, #tpu.memory_space<vmem>>, vector<1x1x1152xf32>
    %30 = vector.shape_cast %29 : vector<1x1x1152xf32> to vector<1x1152xf32>
    %c0_19 = arith.constant 0 : index
    %c4 = arith.constant 4 : index
    %31 = vector.load %arg2[%c0_19, %c4] : memref<8x36xf32, #tpu.memory_space<vmem>>, vector<8x1xf32>
    %32 = vector.broadcast %31 : vector<8x1xf32> to vector<8x1152xf32>
    %33 = vector.broadcast %30 : vector<1x1152xf32> to vector<8x1152xf32>
    %34 = arith.mulf %32, %33 : vector<8x1152xf32>
    %35 = arith.addf %28, %34 : vector<8x1152xf32>
    %c0_20 = arith.constant 0 : index
    %c1_21 = arith.constant 1 : index
    %c1_22 = arith.constant 1 : index
    %36 = vector.load %arg1[%c0_20, %c1_21, %c1_22] : memref<1x4x1280xf32, #tpu.memory_space<vmem>>, vector<1x1x1152xf32>
    %37 = vector.shape_cast %36 : vector<1x1x1152xf32> to vector<1x1152xf32>
    %c0_23 = arith.constant 0 : index
    %c5 = arith.constant 5 : index
    %38 = vector.load %arg2[%c0_23, %c5] : memref<8x36xf32, #tpu.memory_space<vmem>>, vector<8x1xf32>
    %39 = vector.broadcast %38 : vector<8x1xf32> to vector<8x1152xf32>
    %40 = vector.broadcast %37 : vector<1x1152xf32> to vector<8x1152xf32>
    %41 = arith.mulf %39, %40 : vector<8x1152xf32>
    %42 = arith.addf %35, %41 : vector<8x1152xf32>
    %c0_24 = arith.constant 0 : index
    %c2_25 = arith.constant 2 : index
    %c1_26 = arith.constant 1 : index
    %43 = vector.load %arg1[%c0_24, %c2_25, %c1_26] : memref<1x4x1280xf32, #tpu.memory_space<vmem>>, vector<1x1x1152xf32>
    %44 = vector.shape_cast %43 : vector<1x1x1152xf32> to vector<1x1152xf32>
    %c0_27 = arith.constant 0 : index
    %c6 = arith.constant 6 : index
    %45 = vector.load %arg2[%c0_27, %c6] : memref<8x36xf32, #tpu.memory_space<vmem>>, vector<8x1xf32>
    %46 = vector.broadcast %45 : vector<8x1xf32> to vector<8x1152xf32>
    %47 = vector.broadcast %44 : vector<1x1152xf32> to vector<8x1152xf32>
    %48 = arith.mulf %46, %47 : vector<8x1152xf32>
    %49 = arith.addf %42, %48 : vector<8x1152xf32>
    %c0_28 = arith.constant 0 : index
    %c3_29 = arith.constant 3 : index
    %c1_30 = arith.constant 1 : index
    %50 = vector.load %arg1[%c0_28, %c3_29, %c1_30] : memref<1x4x1280xf32, #tpu.memory_space<vmem>>, vector<1x1x1152xf32>
    %51 = vector.shape_cast %50 : vector<1x1x1152xf32> to vector<1x1152xf32>
    %c0_31 = arith.constant 0 : index
    %c7 = arith.constant 7 : index
    %52 = vector.load %arg2[%c0_31, %c7] : memref<8x36xf32, #tpu.memory_space<vmem>>, vector<8x1xf32>
    %53 = vector.broadcast %52 : vector<8x1xf32> to vector<8x1152xf32>
    %54 = vector.broadcast %51 : vector<1x1152xf32> to vector<8x1152xf32>
    %55 = arith.mulf %53, %54 : vector<8x1152xf32>
    %56 = arith.addf %49, %55 : vector<8x1152xf32>
    %c0_32 = arith.constant 0 : index
    %c0_33 = arith.constant 0 : index
    %c2_34 = arith.constant 2 : index
    %57 = vector.load %arg1[%c0_32, %c0_33, %c2_34] : memref<1x4x1280xf32, #tpu.memory_space<vmem>>, vector<1x1x1152xf32>
    %58 = vector.shape_cast %57 : vector<1x1x1152xf32> to vector<1x1152xf32>
    %c0_35 = arith.constant 0 : index
    %c8 = arith.constant 8 : index
    %59 = vector.load %arg2[%c0_35, %c8] : memref<8x36xf32, #tpu.memory_space<vmem>>, vector<8x1xf32>
    %60 = vector.broadcast %59 : vector<8x1xf32> to vector<8x1152xf32>
    %61 = vector.broadcast %58 : vector<1x1152xf32> to vector<8x1152xf32>
    %62 = arith.mulf %60, %61 : vector<8x1152xf32>
    %63 = arith.addf %56, %62 : vector<8x1152xf32>
    %c0_36 = arith.constant 0 : index
    %c1_37 = arith.constant 1 : index
    %c2_38 = arith.constant 2 : index
    %64 = vector.load %arg1[%c0_36, %c1_37, %c2_38] : memref<1x4x1280xf32, #tpu.memory_space<vmem>>, vector<1x1x1152xf32>
    %65 = vector.shape_cast %64 : vector<1x1x1152xf32> to vector<1x1152xf32>
    %c0_39 = arith.constant 0 : index
    %c9 = arith.constant 9 : index
    %66 = vector.load %arg2[%c0_39, %c9] : memref<8x36xf32, #tpu.memory_space<vmem>>, vector<8x1xf32>
    %67 = vector.broadcast %66 : vector<8x1xf32> to vector<8x1152xf32>
    %68 = vector.broadcast %65 : vector<1x1152xf32> to vector<8x1152xf32>
    %69 = arith.mulf %67, %68 : vector<8x1152xf32>
    %70 = arith.addf %63, %69 : vector<8x1152xf32>
    %c0_40 = arith.constant 0 : index
    %c2_41 = arith.constant 2 : index
    %c2_42 = arith.constant 2 : index
    %71 = vector.load %arg1[%c0_40, %c2_41, %c2_42] : memref<1x4x1280xf32, #tpu.memory_space<vmem>>, vector<1x1x1152xf32>
    %72 = vector.shape_cast %71 : vector<1x1x1152xf32> to vector<1x1152xf32>
    %c0_43 = arith.constant 0 : index
    %c10 = arith.constant 10 : index
    %73 = vector.load %arg2[%c0_43, %c10] : memref<8x36xf32, #tpu.memory_space<vmem>>, vector<8x1xf32>
    %74 = vector.broadcast %73 : vector<8x1xf32> to vector<8x1152xf32>
    %75 = vector.broadcast %72 : vector<1x1152xf32> to vector<8x1152xf32>
    %76 = arith.mulf %74, %75 : vector<8x1152xf32>
    %77 = arith.addf %70, %76 : vector<8x1152xf32>
    %c0_44 = arith.constant 0 : index
    %c3_45 = arith.constant 3 : index
    %c2_46 = arith.constant 2 : index
    %78 = vector.load %arg1[%c0_44, %c3_45, %c2_46] : memref<1x4x1280xf32, #tpu.memory_space<vmem>>, vector<1x1x1152xf32>
    %79 = vector.shape_cast %78 : vector<1x1x1152xf32> to vector<1x1152xf32>
    %c0_47 = arith.constant 0 : index
    %c11 = arith.constant 11 : index
    %80 = vector.load %arg2[%c0_47, %c11] : memref<8x36xf32, #tpu.memory_space<vmem>>, vector<8x1xf32>
    %81 = vector.broadcast %80 : vector<8x1xf32> to vector<8x1152xf32>
    %82 = vector.broadcast %79 : vector<1x1152xf32> to vector<8x1152xf32>
    %83 = arith.mulf %81, %82 : vector<8x1152xf32>
    %84 = arith.addf %77, %83 : vector<8x1152xf32>
    %c0_48 = arith.constant 0 : index
    %c0_49 = arith.constant 0 : index
    %c34 = arith.constant 34 : index
    %85 = vector.load %arg1[%c0_48, %c0_49, %c34] : memref<1x4x1280xf32, #tpu.memory_space<vmem>>, vector<1x1x1152xf32>
    %86 = vector.shape_cast %85 : vector<1x1x1152xf32> to vector<1x1152xf32>
    %c0_50 = arith.constant 0 : index
    %c12 = arith.constant 12 : index
    %87 = vector.load %arg2[%c0_50, %c12] : memref<8x36xf32, #tpu.memory_space<vmem>>, vector<8x1xf32>
    %88 = vector.broadcast %87 : vector<8x1xf32> to vector<8x1152xf32>
    %89 = vector.broadcast %86 : vector<1x1152xf32> to vector<8x1152xf32>
    %90 = arith.mulf %88, %89 : vector<8x1152xf32>
    %91 = arith.addf %84, %90 : vector<8x1152xf32>
    %c0_51 = arith.constant 0 : index
    %c1_52 = arith.constant 1 : index
    %c34_53 = arith.constant 34 : index
    %92 = vector.load %arg1[%c0_51, %c1_52, %c34_53] : memref<1x4x1280xf32, #tpu.memory_space<vmem>>, vector<1x1x1152xf32>
    %93 = vector.shape_cast %92 : vector<1x1x1152xf32> to vector<1x1152xf32>
    %c0_54 = arith.constant 0 : index
    %c13 = arith.constant 13 : index
    %94 = vector.load %arg2[%c0_54, %c13] : memref<8x36xf32, #tpu.memory_space<vmem>>, vector<8x1xf32>
    %95 = vector.broadcast %94 : vector<8x1xf32> to vector<8x1152xf32>
    %96 = vector.broadcast %93 : vector<1x1152xf32> to vector<8x1152xf32>
    %97 = arith.mulf %95, %96 : vector<8x1152xf32>
    %98 = arith.addf %91, %97 : vector<8x1152xf32>
    %c0_55 = arith.constant 0 : index
    %c2_56 = arith.constant 2 : index
    %c34_57 = arith.constant 34 : index
    %99 = vector.load %arg1[%c0_55, %c2_56, %c34_57] : memref<1x4x1280xf32, #tpu.memory_space<vmem>>, vector<1x1x1152xf32>
    %100 = vector.shape_cast %99 : vector<1x1x1152xf32> to vector<1x1152xf32>
    %c0_58 = arith.constant 0 : index
    %c14 = arith.constant 14 : index
    %101 = vector.load %arg2[%c0_58, %c14] : memref<8x36xf32, #tpu.memory_space<vmem>>, vector<8x1xf32>
    %102 = vector.broadcast %101 : vector<8x1xf32> to vector<8x1152xf32>
    %103 = vector.broadcast %100 : vector<1x1152xf32> to vector<8x1152xf32>
    %104 = arith.mulf %102, %103 : vector<8x1152xf32>
    %105 = arith.addf %98, %104 : vector<8x1152xf32>
    %c0_59 = arith.constant 0 : index
    %c3_60 = arith.constant 3 : index
    %c34_61 = arith.constant 34 : index
    %106 = vector.load %arg1[%c0_59, %c3_60, %c34_61] : memref<1x4x1280xf32, #tpu.memory_space<vmem>>, vector<1x1x1152xf32>
    %107 = vector.shape_cast %106 : vector<1x1x1152xf32> to vector<1x1152xf32>
    %c0_62 = arith.constant 0 : index
    %c15 = arith.constant 15 : index
    %108 = vector.load %arg2[%c0_62, %c15] : memref<8x36xf32, #tpu.memory_space<vmem>>, vector<8x1xf32>
    %109 = vector.broadcast %108 : vector<8x1xf32> to vector<8x1152xf32>
    %110 = vector.broadcast %107 : vector<1x1152xf32> to vector<8x1152xf32>
    %111 = arith.mulf %109, %110 : vector<8x1152xf32>
    %112 = arith.addf %105, %111 : vector<8x1152xf32>
    %c0_63 = arith.constant 0 : index
    %c0_64 = arith.constant 0 : index
    %c35 = arith.constant 35 : index
    %113 = vector.load %arg1[%c0_63, %c0_64, %c35] : memref<1x4x1280xf32, #tpu.memory_space<vmem>>, vector<1x1x1152xf32>
    %114 = vector.shape_cast %113 : vector<1x1x1152xf32> to vector<1x1152xf32>
    %c0_65 = arith.constant 0 : index
    %c16 = arith.constant 16 : index
    %115 = vector.load %arg2[%c0_65, %c16] : memref<8x36xf32, #tpu.memory_space<vmem>>, vector<8x1xf32>
    %116 = vector.broadcast %115 : vector<8x1xf32> to vector<8x1152xf32>
    %117 = vector.broadcast %114 : vector<1x1152xf32> to vector<8x1152xf32>
    %118 = arith.mulf %116, %117 : vector<8x1152xf32>
    %119 = arith.addf %112, %118 : vector<8x1152xf32>
    %c0_66 = arith.constant 0 : index
    %c1_67 = arith.constant 1 : index
    %c35_68 = arith.constant 35 : index
    %120 = vector.load %arg1[%c0_66, %c1_67, %c35_68] : memref<1x4x1280xf32, #tpu.memory_space<vmem>>, vector<1x1x1152xf32>
    %121 = vector.shape_cast %120 : vector<1x1x1152xf32> to vector<1x1152xf32>
    %c0_69 = arith.constant 0 : index
    %c17 = arith.constant 17 : index
    %122 = vector.load %arg2[%c0_69, %c17] : memref<8x36xf32, #tpu.memory_space<vmem>>, vector<8x1xf32>
    %123 = vector.broadcast %122 : vector<8x1xf32> to vector<8x1152xf32>
    %124 = vector.broadcast %121 : vector<1x1152xf32> to vector<8x1152xf32>
    %125 = arith.mulf %123, %124 : vector<8x1152xf32>
    %126 = arith.addf %119, %125 : vector<8x1152xf32>
    %c0_70 = arith.constant 0 : index
    %c2_71 = arith.constant 2 : index
    %c35_72 = arith.constant 35 : index
    %127 = vector.load %arg1[%c0_70, %c2_71, %c35_72] : memref<1x4x1280xf32, #tpu.memory_space<vmem>>, vector<1x1x1152xf32>
    %128 = vector.shape_cast %127 : vector<1x1x1152xf32> to vector<1x1152xf32>
    %c0_73 = arith.constant 0 : index
    %c18 = arith.constant 18 : index
    %129 = vector.load %arg2[%c0_73, %c18] : memref<8x36xf32, #tpu.memory_space<vmem>>, vector<8x1xf32>
    %130 = vector.broadcast %129 : vector<8x1xf32> to vector<8x1152xf32>
    %131 = vector.broadcast %128 : vector<1x1152xf32> to vector<8x1152xf32>
    %132 = arith.mulf %130, %131 : vector<8x1152xf32>
    %133 = arith.addf %126, %132 : vector<8x1152xf32>
    %c0_74 = arith.constant 0 : index
    %c3_75 = arith.constant 3 : index
    %c35_76 = arith.constant 35 : index
    %134 = vector.load %arg1[%c0_74, %c3_75, %c35_76] : memref<1x4x1280xf32, #tpu.memory_space<vmem>>, vector<1x1x1152xf32>
    %135 = vector.shape_cast %134 : vector<1x1x1152xf32> to vector<1x1152xf32>
    %c0_77 = arith.constant 0 : index
    %c19 = arith.constant 19 : index
    %136 = vector.load %arg2[%c0_77, %c19] : memref<8x36xf32, #tpu.memory_space<vmem>>, vector<8x1xf32>
    %137 = vector.broadcast %136 : vector<8x1xf32> to vector<8x1152xf32>
    %138 = vector.broadcast %135 : vector<1x1152xf32> to vector<8x1152xf32>
    %139 = arith.mulf %137, %138 : vector<8x1152xf32>
    %140 = arith.addf %133, %139 : vector<8x1152xf32>
    %c0_78 = arith.constant 0 : index
    %c0_79 = arith.constant 0 : index
    %c36 = arith.constant 36 : index
    %141 = vector.load %arg1[%c0_78, %c0_79, %c36] : memref<1x4x1280xf32, #tpu.memory_space<vmem>>, vector<1x1x1152xf32>
    %142 = vector.shape_cast %141 : vector<1x1x1152xf32> to vector<1x1152xf32>
    %c0_80 = arith.constant 0 : index
    %c20 = arith.constant 20 : index
    %143 = vector.load %arg2[%c0_80, %c20] : memref<8x36xf32, #tpu.memory_space<vmem>>, vector<8x1xf32>
    %144 = vector.broadcast %143 : vector<8x1xf32> to vector<8x1152xf32>
    %145 = vector.broadcast %142 : vector<1x1152xf32> to vector<8x1152xf32>
    %146 = arith.mulf %144, %145 : vector<8x1152xf32>
    %147 = arith.addf %140, %146 : vector<8x1152xf32>
    %c0_81 = arith.constant 0 : index
    %c1_82 = arith.constant 1 : index
    %c36_83 = arith.constant 36 : index
    %148 = vector.load %arg1[%c0_81, %c1_82, %c36_83] : memref<1x4x1280xf32, #tpu.memory_space<vmem>>, vector<1x1x1152xf32>
    %149 = vector.shape_cast %148 : vector<1x1x1152xf32> to vector<1x1152xf32>
    %c0_84 = arith.constant 0 : index
    %c21 = arith.constant 21 : index
    %150 = vector.load %arg2[%c0_84, %c21] : memref<8x36xf32, #tpu.memory_space<vmem>>, vector<8x1xf32>
    %151 = vector.broadcast %150 : vector<8x1xf32> to vector<8x1152xf32>
    %152 = vector.broadcast %149 : vector<1x1152xf32> to vector<8x1152xf32>
    %153 = arith.mulf %151, %152 : vector<8x1152xf32>
    %154 = arith.addf %147, %153 : vector<8x1152xf32>
    %c0_85 = arith.constant 0 : index
    %c2_86 = arith.constant 2 : index
    %c36_87 = arith.constant 36 : index
    %155 = vector.load %arg1[%c0_85, %c2_86, %c36_87] : memref<1x4x1280xf32, #tpu.memory_space<vmem>>, vector<1x1x1152xf32>
    %156 = vector.shape_cast %155 : vector<1x1x1152xf32> to vector<1x1152xf32>
    %c0_88 = arith.constant 0 : index
    %c22 = arith.constant 22 : index
    %157 = vector.load %arg2[%c0_88, %c22] : memref<8x36xf32, #tpu.memory_space<vmem>>, vector<8x1xf32>
    %158 = vector.broadcast %157 : vector<8x1xf32> to vector<8x1152xf32>
    %159 = vector.broadcast %156 : vector<1x1152xf32> to vector<8x1152xf32>
    %160 = arith.mulf %158, %159 : vector<8x1152xf32>
    %161 = arith.addf %154, %160 : vector<8x1152xf32>
    %c0_89 = arith.constant 0 : index
    %c3_90 = arith.constant 3 : index
    %c36_91 = arith.constant 36 : index
    %162 = vector.load %arg1[%c0_89, %c3_90, %c36_91] : memref<1x4x1280xf32, #tpu.memory_space<vmem>>, vector<1x1x1152xf32>
    %163 = vector.shape_cast %162 : vector<1x1x1152xf32> to vector<1x1152xf32>
    %c0_92 = arith.constant 0 : index
    %c23 = arith.constant 23 : index
    %164 = vector.load %arg2[%c0_92, %c23] : memref<8x36xf32, #tpu.memory_space<vmem>>, vector<8x1xf32>
    %165 = vector.broadcast %164 : vector<8x1xf32> to vector<8x1152xf32>
    %166 = vector.broadcast %163 : vector<1x1152xf32> to vector<8x1152xf32>
    %167 = arith.mulf %165, %166 : vector<8x1152xf32>
    %168 = arith.addf %161, %167 : vector<8x1152xf32>
    %c0_93 = arith.constant 0 : index
    %c0_94 = arith.constant 0 : index
    %c68 = arith.constant 68 : index
    %169 = vector.load %arg1[%c0_93, %c0_94, %c68] : memref<1x4x1280xf32, #tpu.memory_space<vmem>>, vector<1x1x1152xf32>
    %170 = vector.shape_cast %169 : vector<1x1x1152xf32> to vector<1x1152xf32>
    %c0_95 = arith.constant 0 : index
    %c24 = arith.constant 24 : index
    %171 = vector.load %arg2[%c0_95, %c24] : memref<8x36xf32, #tpu.memory_space<vmem>>, vector<8x1xf32>
    %172 = vector.broadcast %171 : vector<8x1xf32> to vector<8x1152xf32>
    %173 = vector.broadcast %170 : vector<1x1152xf32> to vector<8x1152xf32>
    %174 = arith.mulf %172, %173 : vector<8x1152xf32>
    %175 = arith.addf %168, %174 : vector<8x1152xf32>
    %c0_96 = arith.constant 0 : index
    %c1_97 = arith.constant 1 : index
    %c68_98 = arith.constant 68 : index
    %176 = vector.load %arg1[%c0_96, %c1_97, %c68_98] : memref<1x4x1280xf32, #tpu.memory_space<vmem>>, vector<1x1x1152xf32>
    %177 = vector.shape_cast %176 : vector<1x1x1152xf32> to vector<1x1152xf32>
    %c0_99 = arith.constant 0 : index
    %c25 = arith.constant 25 : index
    %178 = vector.load %arg2[%c0_99, %c25] : memref<8x36xf32, #tpu.memory_space<vmem>>, vector<8x1xf32>
    %179 = vector.broadcast %178 : vector<8x1xf32> to vector<8x1152xf32>
    %180 = vector.broadcast %177 : vector<1x1152xf32> to vector<8x1152xf32>
    %181 = arith.mulf %179, %180 : vector<8x1152xf32>
    %182 = arith.addf %175, %181 : vector<8x1152xf32>
    %c0_100 = arith.constant 0 : index
    %c2_101 = arith.constant 2 : index
    %c68_102 = arith.constant 68 : index
    %183 = vector.load %arg1[%c0_100, %c2_101, %c68_102] : memref<1x4x1280xf32, #tpu.memory_space<vmem>>, vector<1x1x1152xf32>
    %184 = vector.shape_cast %183 : vector<1x1x1152xf32> to vector<1x1152xf32>
    %c0_103 = arith.constant 0 : index
    %c26 = arith.constant 26 : index
    %185 = vector.load %arg2[%c0_103, %c26] : memref<8x36xf32, #tpu.memory_space<vmem>>, vector<8x1xf32>
    %186 = vector.broadcast %185 : vector<8x1xf32> to vector<8x1152xf32>
    %187 = vector.broadcast %184 : vector<1x1152xf32> to vector<8x1152xf32>
    %188 = arith.mulf %186, %187 : vector<8x1152xf32>
    %189 = arith.addf %182, %188 : vector<8x1152xf32>
    %c0_104 = arith.constant 0 : index
    %c3_105 = arith.constant 3 : index
    %c68_106 = arith.constant 68 : index
    %190 = vector.load %arg1[%c0_104, %c3_105, %c68_106] : memref<1x4x1280xf32, #tpu.memory_space<vmem>>, vector<1x1x1152xf32>
    %191 = vector.shape_cast %190 : vector<1x1x1152xf32> to vector<1x1152xf32>
    %c0_107 = arith.constant 0 : index
    %c27 = arith.constant 27 : index
    %192 = vector.load %arg2[%c0_107, %c27] : memref<8x36xf32, #tpu.memory_space<vmem>>, vector<8x1xf32>
    %193 = vector.broadcast %192 : vector<8x1xf32> to vector<8x1152xf32>
    %194 = vector.broadcast %191 : vector<1x1152xf32> to vector<8x1152xf32>
    %195 = arith.mulf %193, %194 : vector<8x1152xf32>
    %196 = arith.addf %189, %195 : vector<8x1152xf32>
    %c0_108 = arith.constant 0 : index
    %c0_109 = arith.constant 0 : index
    %c69 = arith.constant 69 : index
    %197 = vector.load %arg1[%c0_108, %c0_109, %c69] : memref<1x4x1280xf32, #tpu.memory_space<vmem>>, vector<1x1x1152xf32>
    %198 = vector.shape_cast %197 : vector<1x1x1152xf32> to vector<1x1152xf32>
    %c0_110 = arith.constant 0 : index
    %c28 = arith.constant 28 : index
    %199 = vector.load %arg2[%c0_110, %c28] : memref<8x36xf32, #tpu.memory_space<vmem>>, vector<8x1xf32>
    %200 = vector.broadcast %199 : vector<8x1xf32> to vector<8x1152xf32>
    %201 = vector.broadcast %198 : vector<1x1152xf32> to vector<8x1152xf32>
    %202 = arith.mulf %200, %201 : vector<8x1152xf32>
    %203 = arith.addf %196, %202 : vector<8x1152xf32>
    %c0_111 = arith.constant 0 : index
    %c1_112 = arith.constant 1 : index
    %c69_113 = arith.constant 69 : index
    %204 = vector.load %arg1[%c0_111, %c1_112, %c69_113] : memref<1x4x1280xf32, #tpu.memory_space<vmem>>, vector<1x1x1152xf32>
    %205 = vector.shape_cast %204 : vector<1x1x1152xf32> to vector<1x1152xf32>
    %c0_114 = arith.constant 0 : index
    %c29 = arith.constant 29 : index
    %206 = vector.load %arg2[%c0_114, %c29] : memref<8x36xf32, #tpu.memory_space<vmem>>, vector<8x1xf32>
    %207 = vector.broadcast %206 : vector<8x1xf32> to vector<8x1152xf32>
    %208 = vector.broadcast %205 : vector<1x1152xf32> to vector<8x1152xf32>
    %209 = arith.mulf %207, %208 : vector<8x1152xf32>
    %210 = arith.addf %203, %209 : vector<8x1152xf32>
    %c0_115 = arith.constant 0 : index
    %c2_116 = arith.constant 2 : index
    %c69_117 = arith.constant 69 : index
    %211 = vector.load %arg1[%c0_115, %c2_116, %c69_117] : memref<1x4x1280xf32, #tpu.memory_space<vmem>>, vector<1x1x1152xf32>
    %212 = vector.shape_cast %211 : vector<1x1x1152xf32> to vector<1x1152xf32>
    %c0_118 = arith.constant 0 : index
    %c30 = arith.constant 30 : index
    %213 = vector.load %arg2[%c0_118, %c30] : memref<8x36xf32, #tpu.memory_space<vmem>>, vector<8x1xf32>
    %214 = vector.broadcast %213 : vector<8x1xf32> to vector<8x1152xf32>
    %215 = vector.broadcast %212 : vector<1x1152xf32> to vector<8x1152xf32>
    %216 = arith.mulf %214, %215 : vector<8x1152xf32>
    %217 = arith.addf %210, %216 : vector<8x1152xf32>
    %c0_119 = arith.constant 0 : index
    %c3_120 = arith.constant 3 : index
    %c69_121 = arith.constant 69 : index
    %218 = vector.load %arg1[%c0_119, %c3_120, %c69_121] : memref<1x4x1280xf32, #tpu.memory_space<vmem>>, vector<1x1x1152xf32>
    %219 = vector.shape_cast %218 : vector<1x1x1152xf32> to vector<1x1152xf32>
    %c0_122 = arith.constant 0 : index
    %c31 = arith.constant 31 : index
    %220 = vector.load %arg2[%c0_122, %c31] : memref<8x36xf32, #tpu.memory_space<vmem>>, vector<8x1xf32>
    %221 = vector.broadcast %220 : vector<8x1xf32> to vector<8x1152xf32>
    %222 = vector.broadcast %219 : vector<1x1152xf32> to vector<8x1152xf32>
    %223 = arith.mulf %221, %222 : vector<8x1152xf32>
    %224 = arith.addf %217, %223 : vector<8x1152xf32>
    %c0_123 = arith.constant 0 : index
    %c0_124 = arith.constant 0 : index
    %c70 = arith.constant 70 : index
    %225 = vector.load %arg1[%c0_123, %c0_124, %c70] : memref<1x4x1280xf32, #tpu.memory_space<vmem>>, vector<1x1x1152xf32>
    %226 = vector.shape_cast %225 : vector<1x1x1152xf32> to vector<1x1152xf32>
    %c0_125 = arith.constant 0 : index
    %c32 = arith.constant 32 : index
    %227 = vector.load %arg2[%c0_125, %c32] : memref<8x36xf32, #tpu.memory_space<vmem>>, vector<8x1xf32>
    %228 = vector.broadcast %227 : vector<8x1xf32> to vector<8x1152xf32>
    %229 = vector.broadcast %226 : vector<1x1152xf32> to vector<8x1152xf32>
    %230 = arith.mulf %228, %229 : vector<8x1152xf32>
    %231 = arith.addf %224, %230 : vector<8x1152xf32>
    %c0_126 = arith.constant 0 : index
    %c1_127 = arith.constant 1 : index
    %c70_128 = arith.constant 70 : index
    %232 = vector.load %arg1[%c0_126, %c1_127, %c70_128] : memref<1x4x1280xf32, #tpu.memory_space<vmem>>, vector<1x1x1152xf32>
    %233 = vector.shape_cast %232 : vector<1x1x1152xf32> to vector<1x1152xf32>
    %c0_129 = arith.constant 0 : index
    %c33 = arith.constant 33 : index
    %234 = vector.load %arg2[%c0_129, %c33] : memref<8x36xf32, #tpu.memory_space<vmem>>, vector<8x1xf32>
    %235 = vector.broadcast %234 : vector<8x1xf32> to vector<8x1152xf32>
    %236 = vector.broadcast %233 : vector<1x1152xf32> to vector<8x1152xf32>
    %237 = arith.mulf %235, %236 : vector<8x1152xf32>
    %238 = arith.addf %231, %237 : vector<8x1152xf32>
    %c0_130 = arith.constant 0 : index
    %c2_131 = arith.constant 2 : index
    %c70_132 = arith.constant 70 : index
    %239 = vector.load %arg1[%c0_130, %c2_131, %c70_132] : memref<1x4x1280xf32, #tpu.memory_space<vmem>>, vector<1x1x1152xf32>
    %240 = vector.shape_cast %239 : vector<1x1x1152xf32> to vector<1x1152xf32>
    %c0_133 = arith.constant 0 : index
    %c34_134 = arith.constant 34 : index
    %241 = vector.load %arg2[%c0_133, %c34_134] : memref<8x36xf32, #tpu.memory_space<vmem>>, vector<8x1xf32>
    %242 = vector.broadcast %241 : vector<8x1xf32> to vector<8x1152xf32>
    %243 = vector.broadcast %240 : vector<1x1152xf32> to vector<8x1152xf32>
    %244 = arith.mulf %242, %243 : vector<8x1152xf32>
    %245 = arith.addf %238, %244 : vector<8x1152xf32>
    %c0_135 = arith.constant 0 : index
    %c3_136 = arith.constant 3 : index
    %c70_137 = arith.constant 70 : index
    %246 = vector.load %arg1[%c0_135, %c3_136, %c70_137] : memref<1x4x1280xf32, #tpu.memory_space<vmem>>, vector<1x1x1152xf32>
    %247 = vector.shape_cast %246 : vector<1x1x1152xf32> to vector<1x1152xf32>
    %c0_138 = arith.constant 0 : index
    %c35_139 = arith.constant 35 : index
    %248 = vector.load %arg2[%c0_138, %c35_139] : memref<8x36xf32, #tpu.memory_space<vmem>>, vector<8x1xf32>
    %249 = vector.broadcast %248 : vector<8x1xf32> to vector<8x1152xf32>
    %250 = vector.broadcast %247 : vector<1x1152xf32> to vector<8x1152xf32>
    %251 = arith.mulf %249, %250 : vector<8x1152xf32>
    %252 = arith.addf %245, %251 : vector<8x1152xf32>
    %c0_140 = arith.constant 0 : index
    %c0_141 = arith.constant 0 : index
    %253 = vector.load %arg3[%c0_140, %c0_141] : memref<8x1xf32, #tpu.memory_space<vmem>>, vector<8x1xf32>
    %254 = vector.broadcast %253 : vector<8x1xf32> to vector<8x1152xf32>
    %255 = arith.addf %252, %254 : vector<8x1152xf32>
    %c0_142 = arith.constant 0 : index
    %c0_143 = arith.constant 0 : index
    %c0_144 = arith.constant 0 : index
    %256 = vector.load %arg4[%c0_142, %c0_143, %c0_144] : memref<1x8x1152xf32, #tpu.memory_space<vmem>>, vector<1x8x1152xf32>
    %257 = vector.shape_cast %256 : vector<1x8x1152xf32> to vector<8x1152xf32>
    %258 = vector.shape_cast %255 : vector<8x1152xf32> to vector<1x8x1152xf32>
    tpu.vector_store %arg4[%c0_142, %c0_143, %c0_144], %258 {strides = array<i32>} : memref<1x8x1152xf32, #tpu.memory_space<vmem>>, vector<1x8x1152xf32>,
    return
  }
  func.func @transform_0(%arg0: i32) -> (i32, i32, i32) {
    %c0_i32 = arith.constant 0 : i32
    %c0_i32_0 = arith.constant 0 : i32
    %c0_i32_1 = arith.constant 0 : i32
    return %arg0, %c0_i32, %c0_i32_0 : i32, i32, i32
  }
  func.func @transform_1(%arg0: i32) -> (i32, i32) {
    %c0_i32 = arith.constant 0 : i32
    %c0_i32_0 = arith.constant 0 : i32
    %c0_i32_1 = arith.constant 0 : i32
    return %c0_i32, %c0_i32_0 : i32, i32
  }
  func.func @transform_2(%arg0: i32) -> (i32, i32) {
    %c0_i32 = arith.constant 0 : i32
    %c0_i32_0 = arith.constant 0 : i32
    %c0_i32_1 = arith.constant 0 : i32
    return %c0_i32, %c0_i32_0 : i32, i32
  }
  func.func @transform_3(%arg0: i32) -> (i32, i32, i32) {
    %c0_i32 = arith.constant 0 : i32
    %c0_i32_0 = arith.constant 0 : i32
    %c0_i32_1 = arith.constant 0 : i32
    return %arg0, %c0_i32, %c0_i32_0 : i32, i32, i32
  }
}

</mosaic_0001>

<llo_original>
// kernel: tpu_custom_call.1
$region0: #{tpu_custom_call.1}
  #allocation0 [shape = 'u32[]', space=smem, size = 0x4, offset = 0x4, fixed_abs, tag = 'smem constant byte address 0x4 - core index']
  #allocation1 [shape = 'u32[72,128]{1,0:T(1,128)}', space=vmem, size = 0x9000, scoped, tag = 'internal scratch']
  %s0 = inlined_call_operand.hbm [shape: f32[2,4,1280], index: 0, kind: input, shape index: {}]
  %s1 = inlined_call_operand.vmem [shape: f32[8,36], index: 1, kind: input, shape index: {}]
  %s2 = inlined_call_operand.vmem [shape: f32[8,1], index: 2, kind: input, shape index: {}]
  %s3 = inlined_call_operand.hbm [shape: f32[2,8,1152], index: 3, kind: output, shape index: {}]
  %s4 = sld [smem:[#allocation0]]
  $region49: #{tpu_custom_call.1} parent=0
    _
  %s6 = ssub.s32 1, %s4
  %s7 = scalar_select 0, %s6, %s4
  $region1: #{tpu_custom_call.1} parent=0
    #allocation2 [shape = 'u8[40960]{0}', space=vmem, size = 0xa000, scoped, tag = 'input window, operand 0']
    #allocation3 [shape = 's32[2]{0}', space=sflag, size = 0x8, scoped, tag = 'scoped memory for tpu_custom_call.1']
    #allocation4 [shape = 's32[2]{0}', space=sflag, size = 0x8, scoped, tag = 'scoped memory for tpu_custom_call.1']
    #allocation5 [shape = 'u8[73728]{0}', space=vmem, size = 0x12000, scoped, tag = 'output window, operand 0']
    %8 = vsyncpa [#allocation3], 0
    %s9 = scalar_lea.sflag [#allocation3], 1
    %10 = vsyncpa %s9, 0
    %11 = vsyncpa [#allocation4], 0
    %s12 = scalar_lea.sflag [#allocation4], 1
    %13 = vsyncpa %s12, 0
    loop: start=0, step=1, limit=4
    $region2: #{tpu_custom_call.1} parent=1 // loop_pre_header
      _
    $region3: #{tpu_custom_call.1} parent=1 // loop_header
      %s15 = sphi 0, %s19
      %p16 = scmp.ge.s32.totalorder %s15, 4
      %s25 = sphi 0, %s27
      %s28 = sphi 0, %s25
      %s29 = sphi 0, %s28
      %s45 = sphi 0, %s29
      %s49 = sphi 0, %s49
      %s51 = sphi 0, %s49
      %s52 = sphi 0, %s51
      %s66 = sphi 0, %s52
      %s70 = sphi 0, %s70
      %s72 = sphi 0, %s70
      %s73 = sphi 0, %s72
      %s87 = sphi 0, %s73
      %s93 = sphi 0, %s95
      %s96 = sphi 0, %s93
      %s97 = sphi 0, %s96
      %s113 = sphi 0, %s97
    $region4: #{tpu_custom_call.1} parent=1 // loop_header_branch
      %18 = sbr.rel (%p16) target = $region8
    $region5: #{tpu_custom_call.1} parent=1 // loop_body
      %s20 = ssub.s32 %s15, 1
      %s21 = ssub.s32 %s15, 2
      %s22 = sadd.s32 %s15, 1
      %s23 = ssub.s32 %s15, %s22
      %p24 = scmp.eq.s32.totalorder %s23, 0
      %s26 = sadd.s32 %s25, 1
      %s27 = scalar_select %p24, %s25, %s26
      %p30 = pneg %p24
      %p31 = scmp.eq.s32.totalorder %s15, 1
      %p32 = por %p30, %p31
      %p33 = scmp.ne.s32.totalorder %s25, %s28
      %p34 = scmp.eq.s32.totalorder %s15, 0
      %p35 = por %p33, %p34
      %p36 = scmp.ne.s32.totalorder %s25, %s28
      %p37 = scmp.eq.s32.totalorder %s20, 1
      %p38 = por %p36, %p37
      %p39 = scmp.ne.s32.totalorder %s28, %s29
      %p40 = scmp.eq.s32.totalorder %s20, 0
      %p41 = por %p39, %p40
      %p42 = scmp.ne.s32.totalorder %s28, %s29
      %p43 = scmp.eq.s32.totalorder %s21, 1
      %p44 = por %p42, %p43
      %p46 = scmp.ne.s32.totalorder %s29, %s45
      %p47 = scmp.eq.s32.totalorder %s21, 0
      %p48 = por %p46, %p47
      %s50 = sadd.s32 %s49, 1
      %p53 = scmp.eq.s32.totalorder %s15, 1
      %p54 = scmp.ne.s32.totalorder %s49, %s51
      %p55 = scmp.eq.s32.totalorder %s15, 0
      %p56 = por %p54, %p55
      %p57 = scmp.ne.s32.totalorder %s49, %s51
      %p58 = scmp.eq.s32.totalorder %s20, 1
      %p59 = por %p57, %p58
      %p60 = scmp.ne.s32.totalorder %s51, %s52
      %p61 = scmp.eq.s32.totalorder %s20, 0
      %p62 = por %p60, %p61
      %p63 = scmp.ne.s32.totalorder %s51, %s52
      %p64 = scmp.eq.s32.totalorder %s21, 1
      %p65 = por %p63, %p64
      %p67 = scmp.ne.s32.totalorder %s52, %s66
      %p68 = scmp.eq.s32.totalorder %s21, 0
      %p69 = por %p67, %p68
      %s71 = sadd.s32 %s70, 1
      %p74 = scmp.eq.s32.totalorder %s15, 1
      %p75 = scmp.ne.s32.totalorder %s70, %s72
      %p76 = scmp.eq.s32.totalorder %s15, 0
      %p77 = por %p75, %p76
      %p78 = scmp.ne.s32.totalorder %s70, %s72
      %p79 = scmp.eq.s32.totalorder %s20, 1
      %p80 = por %p78, %p79
      %p81 = scmp.ne.s32.totalorder %s72, %s73
      %p82 = scmp.eq.s32.totalorder %s20, 0
      %p83 = por %p81, %p82
      %p84 = scmp.ne.s32.totalorder %s72, %s73
      %p85 = scmp.eq.s32.totalorder %s21, 1
      %p86 = por %p84, %p85
      %p88 = scmp.ne.s32.totalorder %s73, %s87
      %p89 = scmp.eq.s32.totalorder %s21, 0
      %p90 = por %p88, %p89
      %s91 = ssub.s32 %s15, %s22
      %p92 = scmp.eq.s32.totalorder %s91, 0
      %s94 = sadd.s32 %s93, 1
      %s95 = scalar_select %p92, %s93, %s94
      %p98 = pneg %p92
      %p99 = scmp.eq.s32.totalorder %s15, 1
      %p100 = por %p98, %p99
      %p101 = scmp.ne.s32.totalorder %s93, %s96
      %p102 = scmp.eq.s32.totalorder %s15, 0
      %p103 = por %p101, %p102
      %p104 = scmp.ne.s32.totalorder %s93, %s96
      %p105 = scmp.eq.s32.totalorder %s20, 1
      %p106 = por %p104, %p105
      %p107 = scmp.ne.s32.totalorder %s96, %s97
      %p108 = scmp.eq.s32.totalorder %s20, 0
      %p109 = por %p107, %p108
      %p110 = scmp.ne.s32.totalorder %s96, %s97
      %p111 = scmp.eq.s32.totalorder %s21, 1
      %p112 = por %p110, %p111
      %p114 = scmp.ne.s32.totalorder %s97, %s113
      %p115 = scmp.eq.s32.totalorder %s21, 0
      %p116 = por %p114, %p115
      %p117 = scmp.le.s32.totalorder 1, %s15
      %p118 = scmp.lt.s32.totalorder %s15, 3
      %p119 = pnand %p117, %p118
      %p120 = pneg %p119
      // Predicated region
      $region9: #{tpu_custom_call.1} parent=5 // pred_check
        _
      $region10: #{tpu_custom_call.1} parent=5 // pred_check_branch
        %122 = sbr.rel (%p119) target = $region12
      $region11: #{tpu_custom_call.1} parent=5 // pred_region
        %s123 = ssub.s32 %s15, 1
        // Predicated region
        $region13: #{tpu_custom_call.1} parent=11 // pred_check
          %p124 = pneg %p62
        $region14: #{tpu_custom_call.1} parent=11 // pred_check_branch
          %126 = sbr.rel (%p124) target = $region16
        $region15: #{tpu_custom_call.1} parent=11 // pred_region
          _
        $region16: #{tpu_custom_call.1} parent=11 // pred_fallthru
          _
        // Predicated region
        $region17: #{tpu_custom_call.1} parent=11 // pred_check
          %p127 = pneg %p83
        $region18: #{tpu_custom_call.1} parent=11 // pred_check_branch
          %129 = sbr.rel (%p127) target = $region20
        $region19: #{tpu_custom_call.1} parent=11 // pred_region
          _
        $region20: #{tpu_custom_call.1} parent=11 // pred_fallthru
          _
      $region12: #{tpu_custom_call.1} parent=5 // pred_fallthru
        _
      %p130 = scmp.lt.s32.totalorder %s15, 2
      // Predicated region
      $region21: #{tpu_custom_call.1} parent=5 // pred_check
        %p131 = pneg %p130
      $region22: #{tpu_custom_call.1} parent=5 // pred_check_branch
        %133 = sbr.rel (%p131) target = $region24
      $region23: #{tpu_custom_call.1} parent=5 // pred_region
        // Predicated region
        $region25: #{tpu_custom_call.1} parent=23 // pred_check
          %p134 = pneg %p35
        $region26: #{tpu_custom_call.1} parent=23 // pred_check_branch
          %136 = sbr.rel (%p134) target = $region28
        $region27: #{tpu_custom_call.1} parent=23 // pred_region
          %s137 = sand.u32 %s25, 1
          %s138 = scalar_lea.sflag [#allocation3], %s137
          %s139 = sand.u32 %s25, 1
          %s140 = smul.addr %s139, 40
          %s141 = scalar_lea.vmem [#allocation2], %s140
          %143 = vsyncadd %s138, 0
          %s144 = smul.addr %s15, 10
          %s145 = smul.addr %s144, 4
          %s146 = scalar_lea.hbm %s0, %s145
          %s148 = sshll.u32 %s146, 4
          %s149 = int_to_ptr.hbm [resolvable:$true] %s148
          %s150 = sshll.u32 %s141, 4
          %s151 = int_to_ptr.vmem [resolvable:$true] %s150
          %153 = dma.hbm_to_vmem [thread:$0]  %s149, 640, %s151, %s138
        $region28: #{tpu_custom_call.1} parent=23 // pred_fallthru
          _
      $region24: #{tpu_custom_call.1} parent=5 // pred_fallthru
        _
      %p154 = scmp.le.s32.totalorder 1, %s15
      %p155 = scmp.lt.s32.totalorder %s15, 3
      %p156 = pnand %p154, %p155
      %p157 = pneg %p156
      // Predicated region
      $region29: #{tpu_custom_call.1} parent=5 // pred_check
        _
      $region30: #{tpu_custom_call.1} parent=5 // pred_check_branch
        %159 = sbr.rel (%p156) target = $region32
      $region31: #{tpu_custom_call.1} parent=5 // pred_region
        %s160 = ssub.s32 %s15, 1
        %s161 = sand.u32 %s28, 1
        %s162 = scalar_lea.sflag [#allocation3], %s161
        %s163 = sand.u32 %s28, 1
        %s164 = smul.addr %s163, 40
        %s165 = scalar_lea.vmem [#allocation2], %s164
        // Predicated region
        $region33: #{tpu_custom_call.1} parent=31 // pred_check
          %p166 = pneg %p41
        $region34: #{tpu_custom_call.1} parent=31 // pred_check_branch
          %168 = sbr.rel (%p166) target = $region36
        $region35: #{tpu_custom_call.1} parent=31 // pred_region
          %170 = dma.done %s162, 640
        $region36: #{tpu_custom_call.1} parent=31 // pred_fallthru
          _
        %s171 = sand.u32 %s28, 1
        %s172 = scalar_lea.sflag [#allocation3], %s171
        %s173 = sand.u32 %s28, 1
        %s174 = smul.addr %s173, 40
        %s175 = scalar_lea.vmem [#allocation2], %s174
        %p176 = pneg %p41
        %p177 = pneg %p38
        %p178 = pneg %p62
        %p179 = pneg %p59
        %p180 = pneg %p83
        %p181 = pneg %p80
        %p182 = pneg %p109
        %p183 = pneg %p106
        %s184 = sand.u32 %s96, 1
        %s185 = scalar_lea.sflag [#allocation4], %s184
        %s186 = sand.u32 %s96, 1
        %s187 = smul.addr %s186, 72
        %s188 = scalar_lea.vmem [#allocation5], %s187
        %v189 = vld [vmem:[%s165] ss:$4 sm:$0xff]
        %s190 = scalar_lea.vmem %s165, 32 [#allocation2]
        %v191 = vld [vmem:[%s190] ss:$4 sm:$0x1]
        %v192 = vld [vmem:[%s1] sm:$0xff]
        %194 = vset.pattern.permute.xlu0 0
        %195 = vperm.xlu0 %194, %v192
        %v196 = vpop.permute.xlu0 %195
        %v200 = vperm.slane %v189, 0
        %v201 = vperm.slane %v189, 1
        %v202 = vperm.slane %v189, 2
        %v203 = vperm.slane %v189, 3
        %v204 = vperm.slane %v189, 4
        %v205 = vperm.slane %v189, 5
        %v206 = vperm.slane %v189, 6
        %v207 = vperm.slane %v189, 7
        %v208 = vperm.slane %v191, 0
        %v218 = vmul.f32 %v196, %v200
        %v219 = vmul.f32 %v196, %v201
        %v220 = vmul.f32 %v196, %v202
        %v221 = vmul.f32 %v196, %v203
        %v222 = vmul.f32 %v196, %v204
        %v223 = vmul.f32 %v196, %v205
        %v224 = vmul.f32 %v196, %v206
        %v225 = vmul.f32 %v196, %v207
        %v226 = vmul.f32 %v196, %v208
        %v227 = vadd.f32 %v218, 0.0
        %v228 = vadd.f32 %v219, 0.0
        %v229 = vadd.f32 %v220, 0.0
        %v230 = vadd.f32 %v221, 0.0
        %v231 = vadd.f32 %v222, 0.0
        %v232 = vadd.f32 %v223, 0.0
        %v233 = vadd.f32 %v224, 0.0
        %v234 = vadd.f32 %v225, 0.0
        %v235 = vadd.f32 %v226, 0.0
        %s236 = scalar_lea.vmem %s165, 1 [#allocation2]
        %v237 = vld [vmem:[%s236] ss:$4 sm:$0xff]
        %s238 = scalar_lea.vmem %s165, 33 [#allocation2]
        %v239 = vld [vmem:[%s238] ss:$4 sm:$0x1]
        %240 = vset.pattern.permute.xlu0 1
        %241 = vperm.xlu0 %240, %v192
        %v242 = vpop.permute.xlu0 %241
        %v246 = vperm.slane %v237, 0
        %v247 = vperm.slane %v237, 1
        %v248 = vperm.slane %v237, 2
        %v249 = vperm.slane %v237, 3
        %v250 = vperm.slane %v237, 4
        %v251 = vperm.slane %v237, 5
        %v252 = vperm.slane %v237, 6
        %v253 = vperm.slane %v237, 7
        %v254 = vperm.slane %v239, 0
        %v264 = vmul.f32 %v242, %v246
        %v265 = vmul.f32 %v242, %v247
        %v266 = vmul.f32 %v242, %v248
        %v267 = vmul.f32 %v242, %v249
        %v268 = vmul.f32 %v242, %v250
        %v269 = vmul.f32 %v242, %v251
        %v270 = vmul.f32 %v242, %v252
        %v271 = vmul.f32 %v242, %v253
        %v272 = vmul.f32 %v242, %v254
        %v273 = vadd.f32 %v227, %v264
        %v274 = vadd.f32 %v228, %v265
        %v275 = vadd.f32 %v229, %v266
        %v276 = vadd.f32 %v230, %v267
        %v277 = vadd.f32 %v231, %v268
        %v278 = vadd.f32 %v232, %v269
        %v279 = vadd.f32 %v233, %v270
        %v280 = vadd.f32 %v234, %v271
        %v281 = vadd.f32 %v235, %v272
        %s282 = scalar_lea.vmem %s165, 2 [#allocation2]
        %v283 = vld [vmem:[%s282] ss:$4 sm:$0xff]
        %s284 = scalar_lea.vmem %s165, 34 [#allocation2]
        %v285 = vld [vmem:[%s284] ss:$4 sm:$0x1]
        %286 = vset.pattern.permute.xlu0 2
        %287 = vperm.xlu0 %286, %v192
        %v288 = vpop.permute.xlu0 %287
        %v292 = vperm.slane %v283, 0
        %v293 = vperm.slane %v283, 1
        %v294 = vperm.slane %v283, 2
        %v295 = vperm.slane %v283, 3
        %v296 = vperm.slane %v283, 4
        %v297 = vperm.slane %v283, 5
        %v298 = vperm.slane %v283, 6
        %v299 = vperm.slane %v283, 7
        %v300 = vperm.slane %v285, 0
        %v310 = vmul.f32 %v288, %v292
        %v311 = vmul.f32 %v288, %v293
        %v312 = vmul.f32 %v288, %v294
        %v313 = vmul.f32 %v288, %v295
        %v314 = vmul.f32 %v288, %v296
        %v315 = vmul.f32 %v288, %v297
        %v316 = vmul.f32 %v288, %v298
        %v317 = vmul.f32 %v288, %v299
        %v318 = vmul.f32 %v288, %v300
        %v319 = vadd.f32 %v273, %v310
        %v320 = vadd.f32 %v274, %v311
        %v321 = vadd.f32 %v275, %v312
        %v322 = vadd.f32 %v276, %v313
        %v323 = vadd.f32 %v277, %v314
        %v324 = vadd.f32 %v278, %v315
        %v325 = vadd.f32 %v279, %v316
        %v326 = vadd.f32 %v280, %v317
        %v327 = vadd.f32 %v281, %v318
        %s328 = scalar_lea.vmem %s165, 3 [#allocation2]
        %v329 = vld [vmem:[%s328] ss:$4 sm:$0xff]
        %s330 = scalar_lea.vmem %s165, 35 [#allocation2]
        %v331 = vld [vmem:[%s330] ss:$4 sm:$0x1]
        %332 = vset.pattern.permute.xlu0 3
        %333 = vperm.xlu0 %332, %v192
        %v334 = vpop.permute.xlu0 %333
        %v338 = vperm.slane %v329, 0
        %v339 = vperm.slane %v329, 1
        %v340 = vperm.slane %v329, 2
        %v341 = vperm.slane %v329, 3
        %v342 = vperm.slane %v329, 4
        %v343 = vperm.slane %v329, 5
        %v344 = vperm.slane %v329, 6
        %v345 = vperm.slane %v329, 7
        %v346 = vperm.slane %v331, 0
        %v356 = vmul.f32 %v334, %v338
        %v357 = vmul.f32 %v334, %v339
        %v358 = vmul.f32 %v334, %v340
        %v359 = vmul.f32 %v334, %v341
        %v360 = vmul.f32 %v334, %v342
        %v361 = vmul.f32 %v334, %v343
        %v362 = vmul.f32 %v334, %v344
        %v363 = vmul.f32 %v334, %v345
        %v364 = vmul.f32 %v334, %v346
        %v365 = vadd.f32 %v319, %v356
        %v366 = vadd.f32 %v320, %v357
        %v367 = vadd.f32 %v321, %v358
        %v368 = vadd.f32 %v322, %v359
        %v369 = vadd.f32 %v323, %v360
        %v370 = vadd.f32 %v324, %v361
        %v371 = vadd.f32 %v325, %v362
        %v372 = vadd.f32 %v326, %v363
        %v373 = vadd.f32 %v327, %v364
        %v374 = vld [vmem:[%s165] ss:$4 sm:$0xff]
        %s375 = scalar_lea.vmem %s165, 32 [#allocation2]
        %v376 = vld [vmem:[%s375] ss:$4 sm:$0x3]
        %377 = vset.pattern.permute.xlu0 4
        %378 = vperm.xlu0 %377, %v192
        %v379 = vpop.permute.xlu0 %378
        %v383 = vperm.slane %v374, 0
        %v384 = vperm.slane %v374, 1
        %v385 = vperm.slane %v374, 2
        %v386 = vperm.slane %v374, 3
        %v387 = vperm.slane %v374, 4
        %v388 = vperm.slane %v374, 5
        %v389 = vperm.slane %v374, 6
        %v390 = vperm.slane %v374, 7
        %v391 = vperm.slane %v376, 0
        %v392 = vperm.slane %v376, 1
        %v403 = vmul.f32 %v379, %v383
        %v404 = vmul.f32 %v379, %v384
        %v405 = vmul.f32 %v379, %v385
        %v406 = vmul.f32 %v379, %v386
        %v407 = vmul.f32 %v379, %v387
        %v408 = vmul.f32 %v379, %v388
        %v409 = vmul.f32 %v379, %v389
        %v410 = vmul.f32 %v379, %v390
        %v411 = vmul.f32 %v379, %v391
        %v412 = vmul.f32 %v379, %v392
        %423 = vrot.lane.b32.xlu0 %v403, 127
        %v424 = vpop.permute.xlu0 %423
        %425 = vrot.lane.b32.xlu0 %v404, 127
        %v426 = vpop.permute.xlu0 %425
        %427 = vrot.lane.b32.xlu0 %v405, 127
        %v428 = vpop.permute.xlu0 %427
        %429 = vrot.lane.b32.xlu0 %v406, 127
        %v430 = vpop.permute.xlu0 %429
        %431 = vrot.lane.b32.xlu0 %v407, 127
        %v432 = vpop.permute.xlu0 %431
        %433 = vrot.lane.b32.xlu0 %v408, 127
        %v434 = vpop.permute.xlu0 %433
        %435 = vrot.lane.b32.xlu0 %v409, 127
        %v436 = vpop.permute.xlu0 %435
        %437 = vrot.lane.b32.xlu0 %v410, 127
        %v438 = vpop.permute.xlu0 %437
        %439 = vrot.lane.b32.xlu0 %v411, 127
        %v440 = vpop.permute.xlu0 %439
        %441 = vrot.lane.b32.xlu0 %v412, 127
        %v442 = vpop.permute.xlu0 %441
        %vm443 = vcmask 1039360
        %v444 = vsel %vm443, %v424, %v426
        %v445 = vsel %vm443, %v426, %v428
        %v446 = vsel %vm443, %v428, %v430
        %v447 = vsel %vm443, %v430, %v432
        %v448 = vsel %vm443, %v432, %v434
        %v449 = vsel %vm443, %v434, %v436
        %v450 = vsel %vm443, %v436, %v438
        %v451 = vsel %vm443, %v438, %v440
        %v452 = vsel %vm443, %v440, %v442
        %v462 = vadd.f32 %v365, %v444
        %v463 = vadd.f32 %v366, %v445
        %v464 = vadd.f32 %v367, %v446
        %v465 = vadd.f32 %v368, %v447
        %v466 = vadd.f32 %v369, %v448
        %v467 = vadd.f32 %v370, %v449
        %v468 = vadd.f32 %v371, %v450
        %v469 = vadd.f32 %v372, %v451
        %v470 = vadd.f32 %v373, %v452
        %s471 = scalar_lea.vmem %s165, 1 [#allocation2]
        %v472 = vld [vmem:[%s471] ss:$4 sm:$0xff]
        %s473 = scalar_lea.vmem %s165, 33 [#allocation2]
        %v474 = vld [vmem:[%s473] ss:$4 sm:$0x3]
        %475 = vset.pattern.permute.xlu0 5
        %476 = vperm.xlu0 %475, %v192
        %v477 = vpop.permute.xlu0 %476
        %v481 = vperm.slane %v472, 0
        %v482 = vperm.slane %v472, 1
        %v483 = vperm.slane %v472, 2
        %v484 = vperm.slane %v472, 3
        %v485 = vperm.slane %v472, 4
        %v486 = vperm.slane %v472, 5
        %v487 = vperm.slane %v472, 6
        %v488 = vperm.slane %v472, 7
        %v489 = vperm.slane %v474, 0
        %v490 = vperm.slane %v474, 1
        %v501 = vmul.f32 %v477, %v481
        %v502 = vmul.f32 %v477, %v482
        %v503 = vmul.f32 %v477, %v483
        %v504 = vmul.f32 %v477, %v484
        %v505 = vmul.f32 %v477, %v485
        %v506 = vmul.f32 %v477, %v486
        %v507 = vmul.f32 %v477, %v487
        %v508 = vmul.f32 %v477, %v488
        %v509 = vmul.f32 %v477, %v489
        %v510 = vmul.f32 %v477, %v490
        %521 = vrot.lane.b32.xlu0 %v501, 127
        %v522 = vpop.permute.xlu0 %521
        %523 = vrot.lane.b32.xlu0 %v502, 127
        %v524 = vpop.permute.xlu0 %523
        %525 = vrot.lane.b32.xlu0 %v503, 127
        %v526 = vpop.permute.xlu0 %525
        %527 = vrot.lane.b32.xlu0 %v504, 127
        %v528 = vpop.permute.xlu0 %527
        %529 = vrot.lane.b32.xlu0 %v505, 127
        %v530 = vpop.permute.xlu0 %529
        %531 = vrot.lane.b32.xlu0 %v506, 127
        %v532 = vpop.permute.xlu0 %531
        %533 = vrot.lane.b32.xlu0 %v507, 127
        %v534 = vpop.permute.xlu0 %533
        %535 = vrot.lane.b32.xlu0 %v508, 127
        %v536 = vpop.permute.xlu0 %535
        %537 = vrot.lane.b32.xlu0 %v509, 127
        %v538 = vpop.permute.xlu0 %537
        %539 = vrot.lane.b32.xlu0 %v510, 127
        %v540 = vpop.permute.xlu0 %539
        %v541 = vsel %vm443, %v522, %v524
        %v542 = vsel %vm443, %v524, %v526
        %v543 = vsel %vm443, %v526, %v528
        %v544 = vsel %vm443, %v528, %v530
        %v545 = vsel %vm443, %v530, %v532
        %v546 = vsel %vm443, %v532, %v534
        %v547 = vsel %vm443, %v534, %v536
        %v548 = vsel %vm443, %v536, %v538
        %v549 = vsel %vm443, %v538, %v540
        %v559 = vadd.f32 %v462, %v541
        %v560 = vadd.f32 %v463, %v542
        %v561 = vadd.f32 %v464, %v543
        %v562 = vadd.f32 %v465, %v544
        %v563 = vadd.f32 %v466, %v545
        %v564 = vadd.f32 %v467, %v546
        %v565 = vadd.f32 %v468, %v547
        %v566 = vadd.f32 %v469, %v548
        %v567 = vadd.f32 %v470, %v549
        %s568 = scalar_lea.vmem %s165, 2 [#allocation2]
        %v569 = vld [vmem:[%s568] ss:$4 sm:$0xff]
        %s570 = scalar_lea.vmem %s165, 34 [#allocation2]
        %v571 = vld [vmem:[%s570] ss:$4 sm:$0x3]
        %572 = vset.pattern.permute.xlu0 6
        %573 = vperm.xlu0 %572, %v192
        %v574 = vpop.permute.xlu0 %573
        %v578 = vperm.slane %v569, 0
        %v579 = vperm.slane %v569, 1
        %v580 = vperm.slane %v569, 2
        %v581 = vperm.slane %v569, 3
        %v582 = vperm.slane %v569, 4
        %v583 = vperm.slane %v569, 5
        %v584 = vperm.slane %v569, 6
        %v585 = vperm.slane %v569, 7
        %v586 = vperm.slane %v571, 0
        %v587 = vperm.slane %v571, 1
        %v598 = vmul.f32 %v574, %v578
        %v599 = vmul.f32 %v574, %v579
        %v600 = vmul.f32 %v574, %v580
        %v601 = vmul.f32 %v574, %v581
        %v602 = vmul.f32 %v574, %v582
        %v603 = vmul.f32 %v574, %v583
        %v604 = vmul.f32 %v574, %v584
        %v605 = vmul.f32 %v574, %v585
        %v606 = vmul.f32 %v574, %v586
        %v607 = vmul.f32 %v574, %v587
        %618 = vrot.lane.b32.xlu0 %v598, 127
        %v619 = vpop.permute.xlu0 %618
        %620 = vrot.lane.b32.xlu0 %v599, 127
        %v621 = vpop.permute.xlu0 %620
        %622 = vrot.lane.b32.xlu0 %v600, 127
        %v623 = vpop.permute.xlu0 %622
        %624 = vrot.lane.b32.xlu0 %v601, 127
        %v625 = vpop.permute.xlu0 %624
        %626 = vrot.lane.b32.xlu0 %v602, 127
        %v627 = vpop.permute.xlu0 %626
        %628 = vrot.lane.b32.xlu0 %v603, 127
        %v629 = vpop.permute.xlu0 %628
        %630 = vrot.lane.b32.xlu0 %v604, 127
        %v631 = vpop.permute.xlu0 %630
        %632 = vrot.lane.b32.xlu0 %v605, 127
        %v633 = vpop.permute.xlu0 %632
        %634 = vrot.lane.b32.xlu0 %v606, 127
        %v635 = vpop.permute.xlu0 %634
        %636 = vrot.lane.b32.xlu0 %v607, 127
        %v637 = vpop.permute.xlu0 %636
        %v638 = vsel %vm443, %v619, %v621
        %v639 = vsel %vm443, %v621, %v623
        %v640 = vsel %vm443, %v623, %v625
        %v641 = vsel %vm443, %v625, %v627
        %v642 = vsel %vm443, %v627, %v629
        %v643 = vsel %vm443, %v629, %v631
        %v644 = vsel %vm443, %v631, %v633
        %v645 = vsel %vm443, %v633, %v635
        %v646 = vsel %vm443, %v635, %v637
        %v656 = vadd.f32 %v559, %v638
        %v657 = vadd.f32 %v560, %v639
        %v658 = vadd.f32 %v561, %v640
        %v659 = vadd.f32 %v562, %v641
        %v660 = vadd.f32 %v563, %v642
        %v661 = vadd.f32 %v564, %v643
        %v662 = vadd.f32 %v565, %v644
        %v663 = vadd.f32 %v566, %v645
        %v664 = vadd.f32 %v567, %v646
        %s665 = scalar_lea.vmem %s165, 3 [#allocation2]
        %v666 = vld [vmem:[%s665] ss:$4 sm:$0xff]
        %s667 = scalar_lea.vmem %s165, 35 [#allocation2]
        %v668 = vld [vmem:[%s667] ss:$4 sm:$0x3]
        %669 = vset.pattern.permute.xlu0 7
        %670 = vperm.xlu0 %669, %v192
        %v671 = vpop.permute.xlu0 %670
        %v675 = vperm.slane %v666, 0
        %v676 = vperm.slane %v666, 1
        %v677 = vperm.slane %v666, 2
        %v678 = vperm.slane %v666, 3
        %v679 = vperm.slane %v666, 4
        %v680 = vperm.slane %v666, 5
        %v681 = vperm.slane %v666, 6
        %v682 = vperm.slane %v666, 7
        %v683 = vperm.slane %v668, 0
        %v684 = vperm.slane %v668, 1
        %v695 = vmul.f32 %v671, %v675
        %v696 = vmul.f32 %v671, %v676
        %v697 = vmul.f32 %v671, %v677
        %v698 = vmul.f32 %v671, %v678
        %v699 = vmul.f32 %v671, %v679
        %v700 = vmul.f32 %v671, %v680
        %v701 = vmul.f32 %v671, %v681
        %v702 = vmul.f32 %v671, %v682
        %v703 = vmul.f32 %v671, %v683
        %v704 = vmul.f32 %v671, %v684
        %715 = vrot.lane.b32.xlu0 %v695, 127
        %v716 = vpop.permute.xlu0 %715
        %717 = vrot.lane.b32.xlu0 %v696, 127
        %v718 = vpop.permute.xlu0 %717
        %719 = vrot.lane.b32.xlu0 %v697, 127
        %v720 = vpop.permute.xlu0 %719
        %721 = vrot.lane.b32.xlu0 %v698, 127
        %v722 = vpop.permute.xlu0 %721
        %723 = vrot.lane.b32.xlu0 %v699, 127
        %v724 = vpop.permute.xlu0 %723
        %725 = vrot.lane.b32.xlu0 %v700, 127
        %v726 = vpop.permute.xlu0 %725
        %727 = vrot.lane.b32.xlu0 %v701, 127
        %v728 = vpop.permute.xlu0 %727
        %729 = vrot.lane.b32.xlu0 %v702, 127
        %v730 = vpop.permute.xlu0 %729
        %731 = vrot.lane.b32.xlu0 %v703, 127
        %v732 = vpop.permute.xlu0 %731
        %733 = vrot.lane.b32.xlu0 %v704, 127
        %v734 = vpop.permute.xlu0 %733
        %v735 = vsel %vm443, %v716, %v718
        %v736 = vsel %vm443, %v718, %v720
        %v737 = vsel %vm443, %v720, %v722
        %v738 = vsel %vm443, %v722, %v724
        %v739 = vsel %vm443, %v724, %v726
        %v740 = vsel %vm443, %v726, %v728
        %v741 = vsel %vm443, %v728, %v730
        %v742 = vsel %vm443, %v730, %v732
        %v743 = vsel %vm443, %v732, %v734
        %v753 = vadd.f32 %v656, %v735
        %v754 = vadd.f32 %v657, %v736
        %v755 = vadd.f32 %v658, %v737
        %v756 = vadd.f32 %v659, %v738
        %v757 = vadd.f32 %v660, %v739
        %v758 = vadd.f32 %v661, %v740
        %v759 = vadd.f32 %v662, %v741
        %v760 = vadd.f32 %v663, %v742
        %v761 = vadd.f32 %v664, %v743
        %762 = vset.pattern.permute.xlu0 8
        %763 = vperm.xlu0 %762, %v192
        %v764 = vpop.permute.xlu0 %763
        %v766 = vmul.f32 %v764, %v383
        %v767 = vmul.f32 %v764, %v384
        %v768 = vmul.f32 %v764, %v385
        %v769 = vmul.f32 %v764, %v386
        %v770 = vmul.f32 %v764, %v387
        %v771 = vmul.f32 %v764, %v388
        %v772 = vmul.f32 %v764, %v389
        %v773 = vmul.f32 %v764, %v390
        %v774 = vmul.f32 %v764, %v391
        %v775 = vmul.f32 %v764, %v392
        %786 = vrot.lane.b32.xlu0 %v766, 126
        %v787 = vpop.permute.xlu0 %786
        %788 = vrot.lane.b32.xlu0 %v767, 126
        %v789 = vpop.permute.xlu0 %788
        %790 = vrot.lane.b32.xlu0 %v768, 126
        %v791 = vpop.permute.xlu0 %790
        %792 = vrot.lane.b32.xlu0 %v769, 126
        %v793 = vpop.permute.xlu0 %792
        %794 = vrot.lane.b32.xlu0 %v770, 126
        %v795 = vpop.permute.xlu0 %794
        %796 = vrot.lane.b32.xlu0 %v771, 126
        %v797 = vpop.permute.xlu0 %796
        %798 = vrot.lane.b32.xlu0 %v772, 126
        %v799 = vpop.permute.xlu0 %798
        %800 = vrot.lane.b32.xlu0 %v773, 126
        %v801 = vpop.permute.xlu0 %800
        %802 = vrot.lane.b32.xlu0 %v774, 126
        %v803 = vpop.permute.xlu0 %802
        %804 = vrot.lane.b32.xlu0 %v775, 126
        %v805 = vpop.permute.xlu0 %804
        %vm806 = vcmask 1031168
        %v807 = vsel %vm806, %v787, %v789
        %v808 = vsel %vm806, %v789, %v791
        %v809 = vsel %vm806, %v791, %v793
        %v810 = vsel %vm806, %v793, %v795
        %v811 = vsel %vm806, %v795, %v797
        %v812 = vsel %vm806, %v797, %v799
        %v813 = vsel %vm806, %v799, %v801
        %v814 = vsel %vm806, %v801, %v803
        %v815 = vsel %vm806, %v803, %v805
        %v825 = vadd.f32 %v753, %v807
        %v826 = vadd.f32 %v754, %v808
        %v827 = vadd.f32 %v755, %v809
        %v828 = vadd.f32 %v756, %v810
        %v829 = vadd.f32 %v757, %v811
        %v830 = vadd.f32 %v758, %v812
        %v831 = vadd.f32 %v759, %v813
        %v832 = vadd.f32 %v760, %v814
        %v833 = vadd.f32 %v761, %v815
        %834 = vset.pattern.permute.xlu0 9
        %835 = vperm.xlu0 %834, %v192
        %v836 = vpop.permute.xlu0 %835
        %v838 = vmul.f32 %v836, %v481
        %v839 = vmul.f32 %v836, %v482
        %v840 = vmul.f32 %v836, %v483
        %v841 = vmul.f32 %v836, %v484
        %v842 = vmul.f32 %v836, %v485
        %v843 = vmul.f32 %v836, %v486
        %v844 = vmul.f32 %v836, %v487
        %v845 = vmul.f32 %v836, %v488
        %v846 = vmul.f32 %v836, %v489
        %v847 = vmul.f32 %v836, %v490
        %858 = vrot.lane.b32.xlu0 %v838, 126
        %v859 = vpop.permute.xlu0 %858
        %860 = vrot.lane.b32.xlu0 %v839, 126
        %v861 = vpop.permute.xlu0 %860
        %862 = vrot.lane.b32.xlu0 %v840, 126
        %v863 = vpop.permute.xlu0 %862
        %864 = vrot.lane.b32.xlu0 %v841, 126
        %v865 = vpop.permute.xlu0 %864
        %866 = vrot.lane.b32.xlu0 %v842, 126
        %v867 = vpop.permute.xlu0 %866
        %868 = vrot.lane.b32.xlu0 %v843, 126
        %v869 = vpop.permute.xlu0 %868
        %870 = vrot.lane.b32.xlu0 %v844, 126
        %v871 = vpop.permute.xlu0 %870
        %872 = vrot.lane.b32.xlu0 %v845, 126
        %v873 = vpop.permute.xlu0 %872
        %874 = vrot.lane.b32.xlu0 %v846, 126
        %v875 = vpop.permute.xlu0 %874
        %876 = vrot.lane.b32.xlu0 %v847, 126
        %v877 = vpop.permute.xlu0 %876
        %v878 = vsel %vm806, %v859, %v861
        %v879 = vsel %vm806, %v861, %v863
        %v880 = vsel %vm806, %v863, %v865
        %v881 = vsel %vm806, %v865, %v867
        %v882 = vsel %vm806, %v867, %v869
        %v883 = vsel %vm806, %v869, %v871
        %v884 = vsel %vm806, %v871, %v873
        %v885 = vsel %vm806, %v873, %v875
        %v886 = vsel %vm806, %v875, %v877
        %v896 = vadd.f32 %v825, %v878
        %v897 = vadd.f32 %v826, %v879
        %v898 = vadd.f32 %v827, %v880
        %v899 = vadd.f32 %v828, %v881
        %v900 = vadd.f32 %v829, %v882
        %v901 = vadd.f32 %v830, %v883
        %v902 = vadd.f32 %v831, %v884
        %v903 = vadd.f32 %v832, %v885
        %v904 = vadd.f32 %v833, %v886
        %905 = vset.pattern.permute.xlu0 10
        %906 = vperm.xlu0 %905, %v192
        %v907 = vpop.permute.xlu0 %906
        %v909 = vmul.f32 %v907, %v578
        %v910 = vmul.f32 %v907, %v579
        %v911 = vmul.f32 %v907, %v580
        %v912 = vmul.f32 %v907, %v581
        %v913 = vmul.f32 %v907, %v582
        %v914 = vmul.f32 %v907, %v583
        %v915 = vmul.f32 %v907, %v584
        %v916 = vmul.f32 %v907, %v585
        %v917 = vmul.f32 %v907, %v586
        %v918 = vmul.f32 %v907, %v587
        %929 = vrot.lane.b32.xlu0 %v909, 126
        %v930 = vpop.permute.xlu0 %929
        %931 = vrot.lane.b32.xlu0 %v910, 126
        %v932 = vpop.permute.xlu0 %931
        %933 = vrot.lane.b32.xlu0 %v911, 126
        %v934 = vpop.permute.xlu0 %933
        %935 = vrot.lane.b32.xlu0 %v912, 126
        %v936 = vpop.permute.xlu0 %935
        %937 = vrot.lane.b32.xlu0 %v913, 126
        %v938 = vpop.permute.xlu0 %937
        %939 = vrot.lane.b32.xlu0 %v914, 126
        %v940 = vpop.permute.xlu0 %939
        %941 = vrot.lane.b32.xlu0 %v915, 126
        %v942 = vpop.permute.xlu0 %941
        %943 = vrot.lane.b32.xlu0 %v916, 126
        %v944 = vpop.permute.xlu0 %943
        %945 = vrot.lane.b32.xlu0 %v917, 126
        %v946 = vpop.permute.xlu0 %945
        %947 = vrot.lane.b32.xlu0 %v918, 126
        %v948 = vpop.permute.xlu0 %947
        %v949 = vsel %vm806, %v930, %v932
        %v950 = vsel %vm806, %v932, %v934
        %v951 = vsel %vm806, %v934, %v936
        %v952 = vsel %vm806, %v936, %v938
        %v953 = vsel %vm806, %v938, %v940
        %v954 = vsel %vm806, %v940, %v942
        %v955 = vsel %vm806, %v942, %v944
        %v956 = vsel %vm806, %v944, %v946
        %v957 = vsel %vm806, %v946, %v948
        %v967 = vadd.f32 %v896, %v949
        %v968 = vadd.f32 %v897, %v950
        %v969 = vadd.f32 %v898, %v951
        %v970 = vadd.f32 %v899, %v952
        %v971 = vadd.f32 %v900, %v953
        %v972 = vadd.f32 %v901, %v954
        %v973 = vadd.f32 %v902, %v955
        %v974 = vadd.f32 %v903, %v956
        %v975 = vadd.f32 %v904, %v957
        %976 = vset.pattern.permute.xlu0 11
        %977 = vperm.xlu0 %976, %v192
        %v978 = vpop.permute.xlu0 %977
        %v980 = vmul.f32 %v978, %v675
        %v981 = vmul.f32 %v978, %v676
        %v982 = vmul.f32 %v978, %v677
        %v983 = vmul.f32 %v978, %v678
        %v984 = vmul.f32 %v978, %v679
        %v985 = vmul.f32 %v978, %v680
        %v986 = vmul.f32 %v978, %v681
        %v987 = vmul.f32 %v978, %v682
        %v988 = vmul.f32 %v978, %v683
        %v989 = vmul.f32 %v978, %v684
        %1000 = vrot.lane.b32.xlu0 %v980, 126
        %v1001 = vpop.permute.xlu0 %1000
        %1002 = vrot.lane.b32.xlu0 %v981, 126
        %v1003 = vpop.permute.xlu0 %1002
        %1004 = vrot.lane.b32.xlu0 %v982, 126
        %v1005 = vpop.permute.xlu0 %1004
        %1006 = vrot.lane.b32.xlu0 %v983, 126
        %v1007 = vpop.permute.xlu0 %1006
        %1008 = vrot.lane.b32.xlu0 %v984, 126
        %v1009 = vpop.permute.xlu0 %1008
        %1010 = vrot.lane.b32.xlu0 %v985, 126
        %v1011 = vpop.permute.xlu0 %1010
        %1012 = vrot.lane.b32.xlu0 %v986, 126
        %v1013 = vpop.permute.xlu0 %1012
        %1014 = vrot.lane.b32.xlu0 %v987, 126
        %v1015 = vpop.permute.xlu0 %1014
        %1016 = vrot.lane.b32.xlu0 %v988, 126
        %v1017 = vpop.permute.xlu0 %1016
        %1018 = vrot.lane.b32.xlu0 %v989, 126
        %v1019 = vpop.permute.xlu0 %1018
        %v1020 = vsel %vm806, %v1001, %v1003
        %v1021 = vsel %vm806, %v1003, %v1005
        %v1022 = vsel %vm806, %v1005, %v1007
        %v1023 = vsel %vm806, %v1007, %v1009
        %v1024 = vsel %vm806, %v1009, %v1011
        %v1025 = vsel %vm806, %v1011, %v1013
        %v1026 = vsel %vm806, %v1013, %v1015
        %v1027 = vsel %vm806, %v1015, %v1017
        %v1028 = vsel %vm806, %v1017, %v1019
        %v1038 = vadd.f32 %v967, %v1020
        %v1039 = vadd.f32 %v968, %v1021
        %v1040 = vadd.f32 %v969, %v1022
        %v1041 = vadd.f32 %v970, %v1023
        %v1042 = vadd.f32 %v971, %v1024
        %v1043 = vadd.f32 %v972, %v1025
        %v1044 = vadd.f32 %v973, %v1026
        %v1045 = vadd.f32 %v974, %v1027
        %v1046 = vadd.f32 %v975, %v1028
        %1047 = vset.pattern.permute.xlu0 12
        %1048 = vperm.xlu0 %1047, %v192
        %v1049 = vpop.permute.xlu0 %1048
        %v1051 = vmul.f32 %v1049, %v383
        %v1052 = vmul.f32 %v1049, %v384
        %v1053 = vmul.f32 %v1049, %v385
        %v1054 = vmul.f32 %v1049, %v386
        %v1055 = vmul.f32 %v1049, %v387
        %v1056 = vmul.f32 %v1049, %v388
        %v1057 = vmul.f32 %v1049, %v389
        %v1058 = vmul.f32 %v1049, %v390
        %v1059 = vmul.f32 %v1049, %v391
        %v1060 = vmul.f32 %v1049, %v392
        %1071 = vrot.lane.b32.xlu0 %v1051, 94
        %v1072 = vpop.permute.xlu0 %1071
        %1073 = vrot.lane.b32.xlu0 %v1052, 94
        %v1074 = vpop.permute.xlu0 %1073
        %1075 = vrot.lane.b32.xlu0 %v1053, 94
        %v1076 = vpop.permute.xlu0 %1075
        %1077 = vrot.lane.b32.xlu0 %v1054, 94
        %v1078 = vpop.permute.xlu0 %1077
        %1079 = vrot.lane.b32.xlu0 %v1055, 94
        %v1080 = vpop.permute.xlu0 %1079
        %1081 = vrot.lane.b32.xlu0 %v1056, 94
        %v1082 = vpop.permute.xlu0 %1081
        %1083 = vrot.lane.b32.xlu0 %v1057, 94
        %v1084 = vpop.permute.xlu0 %1083
        %1085 = vrot.lane.b32.xlu0 %v1058, 94
        %v1086 = vpop.permute.xlu0 %1085
        %1087 = vrot.lane.b32.xlu0 %v1059, 94
        %v1088 = vpop.permute.xlu0 %1087
        %1089 = vrot.lane.b32.xlu0 %v1060, 94
        %v1090 = vpop.permute.xlu0 %1089
        %vm1091 = vcmask 769024
        %v1092 = vsel %vm1091, %v1072, %v1074
        %v1093 = vsel %vm1091, %v1074, %v1076
        %v1094 = vsel %vm1091, %v1076, %v1078
        %v1095 = vsel %vm1091, %v1078, %v1080
        %v1096 = vsel %vm1091, %v1080, %v1082
        %v1097 = vsel %vm1091, %v1082, %v1084
        %v1098 = vsel %vm1091, %v1084, %v1086
        %v1099 = vsel %vm1091, %v1086, %v1088
        %v1100 = vsel %vm1091, %v1088, %v1090
        %v1110 = vadd.f32 %v1038, %v1092
        %v1111 = vadd.f32 %v1039, %v1093
        %v1112 = vadd.f32 %v1040, %v1094
        %v1113 = vadd.f32 %v1041, %v1095
        %v1114 = vadd.f32 %v1042, %v1096
        %v1115 = vadd.f32 %v1043, %v1097
        %v1116 = vadd.f32 %v1044, %v1098
        %v1117 = vadd.f32 %v1045, %v1099
        %v1118 = vadd.f32 %v1046, %v1100
        %1119 = vset.pattern.permute.xlu0 13
        %1120 = vperm.xlu0 %1119, %v192
        %v1121 = vpop.permute.xlu0 %1120
        %v1123 = vmul.f32 %v1121, %v481
        %v1124 = vmul.f32 %v1121, %v482
        %v1125 = vmul.f32 %v1121, %v483
        %v1126 = vmul.f32 %v1121, %v484
        %v1127 = vmul.f32 %v1121, %v485
        %v1128 = vmul.f32 %v1121, %v486
        %v1129 = vmul.f32 %v1121, %v487
        %v1130 = vmul.f32 %v1121, %v488
        %v1131 = vmul.f32 %v1121, %v489
        %v1132 = vmul.f32 %v1121, %v490
        %1143 = vrot.lane.b32.xlu0 %v1123, 94
        %v1144 = vpop.permute.xlu0 %1143
        %1145 = vrot.lane.b32.xlu0 %v1124, 94
        %v1146 = vpop.permute.xlu0 %1145
        %1147 = vrot.lane.b32.xlu0 %v1125, 94
        %v1148 = vpop.permute.xlu0 %1147
        %1149 = vrot.lane.b32.xlu0 %v1126, 94
        %v1150 = vpop.permute.xlu0 %1149
        %1151 = vrot.lane.b32.xlu0 %v1127, 94
        %v1152 = vpop.permute.xlu0 %1151
        %1153 = vrot.lane.b32.xlu0 %v1128, 94
        %v1154 = vpop.permute.xlu0 %1153
        %1155 = vrot.lane.b32.xlu0 %v1129, 94
        %v1156 = vpop.permute.xlu0 %1155
        %1157 = vrot.lane.b32.xlu0 %v1130, 94
        %v1158 = vpop.permute.xlu0 %1157
        %1159 = vrot.lane.b32.xlu0 %v1131, 94
        %v1160 = vpop.permute.xlu0 %1159
        %1161 = vrot.lane.b32.xlu0 %v1132, 94
        %v1162 = vpop.permute.xlu0 %1161
        %v1163 = vsel %vm1091, %v1144, %v1146
        %v1164 = vsel %vm1091, %v1146, %v1148
        %v1165 = vsel %vm1091, %v1148, %v1150
        %v1166 = vsel %vm1091, %v1150, %v1152
        %v1167 = vsel %vm1091, %v1152, %v1154
        %v1168 = vsel %vm1091, %v1154, %v1156
        %v1169 = vsel %vm1091, %v1156, %v1158
        %v1170 = vsel %vm1091, %v1158, %v1160
        %v1171 = vsel %vm1091, %v1160, %v1162
        %v1181 = vadd.f32 %v1110, %v1163
        %v1182 = vadd.f32 %v1111, %v1164
        %v1183 = vadd.f32 %v1112, %v1165
        %v1184 = vadd.f32 %v1113, %v1166
        %v1185 = vadd.f32 %v1114, %v1167
        %v1186 = vadd.f32 %v1115, %v1168
        %v1187 = vadd.f32 %v1116, %v1169
        %v1188 = vadd.f32 %v1117, %v1170
        %v1189 = vadd.f32 %v1118, %v1171
        %1190 = vset.pattern.permute.xlu0 14
        %1191 = vperm.xlu0 %1190, %v192
        %v1192 = vpop.permute.xlu0 %1191
        %v1194 = vmul.f32 %v1192, %v578
        %v1195 = vmul.f32 %v1192, %v579
        %v1196 = vmul.f32 %v1192, %v580
        %v1197 = vmul.f32 %v1192, %v581
        %v1198 = vmul.f32 %v1192, %v582
        %v1199 = vmul.f32 %v1192, %v583
        %v1200 = vmul.f32 %v1192, %v584
        %v1201 = vmul.f32 %v1192, %v585
        %v1202 = vmul.f32 %v1192, %v586
        %v1203 = vmul.f32 %v1192, %v587
        %1214 = vrot.lane.b32.xlu0 %v1194, 94
        %v1215 = vpop.permute.xlu0 %1214
        %1216 = vrot.lane.b32.xlu0 %v1195, 94
        %v1217 = vpop.permute.xlu0 %1216
        %1218 = vrot.lane.b32.xlu0 %v1196, 94
        %v1219 = vpop.permute.xlu0 %1218
        %1220 = vrot.lane.b32.xlu0 %v1197, 94
        %v1221 = vpop.permute.xlu0 %1220
        %1222 = vrot.lane.b32.xlu0 %v1198, 94
        %v1223 = vpop.permute.xlu0 %1222
        %1224 = vrot.lane.b32.xlu0 %v1199, 94
        %v1225 = vpop.permute.xlu0 %1224
        %1226 = vrot.lane.b32.xlu0 %v1200, 94
        %v1227 = vpop.permute.xlu0 %1226
        %1228 = vrot.lane.b32.xlu0 %v1201, 94
        %v1229 = vpop.permute.xlu0 %1228
        %1230 = vrot.lane.b32.xlu0 %v1202, 94
        %v1231 = vpop.permute.xlu0 %1230
        %1232 = vrot.lane.b32.xlu0 %v1203, 94
        %v1233 = vpop.permute.xlu0 %1232
        %v1234 = vsel %vm1091, %v1215, %v1217
        %v1235 = vsel %vm1091, %v1217, %v1219
        %v1236 = vsel %vm1091, %v1219, %v1221
        %v1237 = vsel %vm1091, %v1221, %v1223
        %v1238 = vsel %vm1091, %v1223, %v1225
        %v1239 = vsel %vm1091, %v1225, %v1227
        %v1240 = vsel %vm1091, %v1227, %v1229
        %v1241 = vsel %vm1091, %v1229, %v1231
        %v1242 = vsel %vm1091, %v1231, %v1233
        %v1252 = vadd.f32 %v1181, %v1234
        %v1253 = vadd.f32 %v1182, %v1235
        %v1254 = vadd.f32 %v1183, %v1236
        %v1255 = vadd.f32 %v1184, %v1237
        %v1256 = vadd.f32 %v1185, %v1238
        %v1257 = vadd.f32 %v1186, %v1239
        %v1258 = vadd.f32 %v1187, %v1240
        %v1259 = vadd.f32 %v1188, %v1241
        %v1260 = vadd.f32 %v1189, %v1242
        %1261 = vset.pattern.permute.xlu0 15
        %1262 = vperm.xlu0 %1261, %v192
        %v1263 = vpop.permute.xlu0 %1262
        %v1265 = vmul.f32 %v1263, %v675
        %v1266 = vmul.f32 %v1263, %v676
        %v1267 = vmul.f32 %v1263, %v677
        %v1268 = vmul.f32 %v1263, %v678
        %v1269 = vmul.f32 %v1263, %v679
        %v1270 = vmul.f32 %v1263, %v680
        %v1271 = vmul.f32 %v1263, %v681
        %v1272 = vmul.f32 %v1263, %v682
        %v1273 = vmul.f32 %v1263, %v683
        %v1274 = vmul.f32 %v1263, %v684
        %1285 = vrot.lane.b32.xlu0 %v1265, 94
        %v1286 = vpop.permute.xlu0 %1285
        %1287 = vrot.lane.b32.xlu0 %v1266, 94
        %v1288 = vpop.permute.xlu0 %1287
        %1289 = vrot.lane.b32.xlu0 %v1267, 94
        %v1290 = vpop.permute.xlu0 %1289
        %1291 = vrot.lane.b32.xlu0 %v1268, 94
        %v1292 = vpop.permute.xlu0 %1291
        %1293 = vrot.lane.b32.xlu0 %v1269, 94
        %v1294 = vpop.permute.xlu0 %1293
        %1295 = vrot.lane.b32.xlu0 %v1270, 94
        %v1296 = vpop.permute.xlu0 %1295
        %1297 = vrot.lane.b32.xlu0 %v1271, 94
        %v1298 = vpop.permute.xlu0 %1297
        %1299 = vrot.lane.b32.xlu0 %v1272, 94
        %v1300 = vpop.permute.xlu0 %1299
        %1301 = vrot.lane.b32.xlu0 %v1273, 94
        %v1302 = vpop.permute.xlu0 %1301
        %1303 = vrot.lane.b32.xlu0 %v1274, 94
        %v1304 = vpop.permute.xlu0 %1303
        %v1305 = vsel %vm1091, %v1286, %v1288
        %v1306 = vsel %vm1091, %v1288, %v1290
        %v1307 = vsel %vm1091, %v1290, %v1292
        %v1308 = vsel %vm1091, %v1292, %v1294
        %v1309 = vsel %vm1091, %v1294, %v1296
        %v1310 = vsel %vm1091, %v1296, %v1298
        %v1311 = vsel %vm1091, %v1298, %v1300
        %v1312 = vsel %vm1091, %v1300, %v1302
        %v1313 = vsel %vm1091, %v1302, %v1304
        %v1323 = vadd.f32 %v1252, %v1305
        %v1324 = vadd.f32 %v1253, %v1306
        %v1325 = vadd.f32 %v1254, %v1307
        %v1326 = vadd.f32 %v1255, %v1308
        %v1327 = vadd.f32 %v1256, %v1309
        %v1328 = vadd.f32 %v1257, %v1310
        %v1329 = vadd.f32 %v1258, %v1311
        %v1330 = vadd.f32 %v1259, %v1312
        %v1331 = vadd.f32 %v1260, %v1313
        %1332 = vset.pattern.permute.xlu0 16
        %1333 = vperm.xlu0 %1332, %v192
        %v1334 = vpop.permute.xlu0 %1333
        %v1336 = vmul.f32 %v1334, %v383
        %v1337 = vmul.f32 %v1334, %v384
        %v1338 = vmul.f32 %v1334, %v385
        %v1339 = vmul.f32 %v1334, %v386
        %v1340 = vmul.f32 %v1334, %v387
        %v1341 = vmul.f32 %v1334, %v388
        %v1342 = vmul.f32 %v1334, %v389
        %v1343 = vmul.f32 %v1334, %v390
        %v1344 = vmul.f32 %v1334, %v391
        %v1345 = vmul.f32 %v1334, %v392
        %1356 = vrot.lane.b32.xlu0 %v1336, 93
        %v1357 = vpop.permute.xlu0 %1356
        %1358 = vrot.lane.b32.xlu0 %v1337, 93
        %v1359 = vpop.permute.xlu0 %1358
        %1360 = vrot.lane.b32.xlu0 %v1338, 93
        %v1361 = vpop.permute.xlu0 %1360
        %1362 = vrot.lane.b32.xlu0 %v1339, 93
        %v1363 = vpop.permute.xlu0 %1362
        %1364 = vrot.lane.b32.xlu0 %v1340, 93
        %v1365 = vpop.permute.xlu0 %1364
        %1366 = vrot.lane.b32.xlu0 %v1341, 93
        %v1367 = vpop.permute.xlu0 %1366
        %1368 = vrot.lane.b32.xlu0 %v1342, 93
        %v1369 = vpop.permute.xlu0 %1368
        %1370 = vrot.lane.b32.xlu0 %v1343, 93
        %v1371 = vpop.permute.xlu0 %1370
        %1372 = vrot.lane.b32.xlu0 %v1344, 93
        %v1373 = vpop.permute.xlu0 %1372
        %1374 = vrot.lane.b32.xlu0 %v1345, 93
        %v1375 = vpop.permute.xlu0 %1374
        %vm1376 = vcmask 760832
        %v1377 = vsel %vm1376, %v1357, %v1359
        %v1378 = vsel %vm1376, %v1359, %v1361
        %v1379 = vsel %vm1376, %v1361, %v1363
        %v1380 = vsel %vm1376, %v1363, %v1365
        %v1381 = vsel %vm1376, %v1365, %v1367
        %v1382 = vsel %vm1376, %v1367, %v1369
        %v1383 = vsel %vm1376, %v1369, %v1371
        %v1384 = vsel %vm1376, %v1371, %v1373
        %v1385 = vsel %vm1376, %v1373, %v1375
        %v1395 = vadd.f32 %v1323, %v1377
        %v1396 = vadd.f32 %v1324, %v1378
        %v1397 = vadd.f32 %v1325, %v1379
        %v1398 = vadd.f32 %v1326, %v1380
        %v1399 = vadd.f32 %v1327, %v1381
        %v1400 = vadd.f32 %v1328, %v1382
        %v1401 = vadd.f32 %v1329, %v1383
        %v1402 = vadd.f32 %v1330, %v1384
        %v1403 = vadd.f32 %v1331, %v1385
        %1404 = vset.pattern.permute.xlu0 17
        %1405 = vperm.xlu0 %1404, %v192
        %v1406 = vpop.permute.xlu0 %1405
        %v1408 = vmul.f32 %v1406, %v481
        %v1409 = vmul.f32 %v1406, %v482
        %v1410 = vmul.f32 %v1406, %v483
        %v1411 = vmul.f32 %v1406, %v484
        %v1412 = vmul.f32 %v1406, %v485
        %v1413 = vmul.f32 %v1406, %v486
        %v1414 = vmul.f32 %v1406, %v487
        %v1415 = vmul.f32 %v1406, %v488
        %v1416 = vmul.f32 %v1406, %v489
        %v1417 = vmul.f32 %v1406, %v490
        %1428 = vrot.lane.b32.xlu0 %v1408, 93
        %v1429 = vpop.permute.xlu0 %1428
        %1430 = vrot.lane.b32.xlu0 %v1409, 93
        %v1431 = vpop.permute.xlu0 %1430
        %1432 = vrot.lane.b32.xlu0 %v1410, 93
        %v1433 = vpop.permute.xlu0 %1432
        %1434 = vrot.lane.b32.xlu0 %v1411, 93
        %v1435 = vpop.permute.xlu0 %1434
        %1436 = vrot.lane.b32.xlu0 %v1412, 93
        %v1437 = vpop.permute.xlu0 %1436
        %1438 = vrot.lane.b32.xlu0 %v1413, 93
        %v1439 = vpop.permute.xlu0 %1438
        %1440 = vrot.lane.b32.xlu0 %v1414, 93
        %v1441 = vpop.permute.xlu0 %1440
        %1442 = vrot.lane.b32.xlu0 %v1415, 93
        %v1443 = vpop.permute.xlu0 %1442
        %1444 = vrot.lane.b32.xlu0 %v1416, 93
        %v1445 = vpop.permute.xlu0 %1444
        %1446 = vrot.lane.b32.xlu0 %v1417, 93
        %v1447 = vpop.permute.xlu0 %1446
        %v1448 = vsel %vm1376, %v1429, %v1431
        %v1449 = vsel %vm1376, %v1431, %v1433
        %v1450 = vsel %vm1376, %v1433, %v1435
        %v1451 = vsel %vm1376, %v1435, %v1437
        %v1452 = vsel %vm1376, %v1437, %v1439
        %v1453 = vsel %vm1376, %v1439, %v1441
        %v1454 = vsel %vm1376, %v1441, %v1443
        %v1455 = vsel %vm1376, %v1443, %v1445
        %v1456 = vsel %vm1376, %v1445, %v1447
        %v1466 = vadd.f32 %v1395, %v1448
        %v1467 = vadd.f32 %v1396, %v1449
        %v1468 = vadd.f32 %v1397, %v1450
        %v1469 = vadd.f32 %v1398, %v1451
        %v1470 = vadd.f32 %v1399, %v1452
        %v1471 = vadd.f32 %v1400, %v1453
        %v1472 = vadd.f32 %v1401, %v1454
        %v1473 = vadd.f32 %v1402, %v1455
        %v1474 = vadd.f32 %v1403, %v1456
        %1475 = vset.pattern.permute.xlu0 18
        %1476 = vperm.xlu0 %1475, %v192
        %v1477 = vpop.permute.xlu0 %1476
        %v1479 = vmul.f32 %v1477, %v578
        %v1480 = vmul.f32 %v1477, %v579
        %v1481 = vmul.f32 %v1477, %v580
        %v1482 = vmul.f32 %v1477, %v581
        %v1483 = vmul.f32 %v1477, %v582
        %v1484 = vmul.f32 %v1477, %v583
        %v1485 = vmul.f32 %v1477, %v584
        %v1486 = vmul.f32 %v1477, %v585
        %v1487 = vmul.f32 %v1477, %v586
        %v1488 = vmul.f32 %v1477, %v587
        %1499 = vrot.lane.b32.xlu0 %v1479, 93
        %v1500 = vpop.permute.xlu0 %1499
        %1501 = vrot.lane.b32.xlu0 %v1480, 93
        %v1502 = vpop.permute.xlu0 %1501
        %1503 = vrot.lane.b32.xlu0 %v1481, 93
        %v1504 = vpop.permute.xlu0 %1503
        %1505 = vrot.lane.b32.xlu0 %v1482, 93
        %v1506 = vpop.permute.xlu0 %1505
        %1507 = vrot.lane.b32.xlu0 %v1483, 93
        %v1508 = vpop.permute.xlu0 %1507
        %1509 = vrot.lane.b32.xlu0 %v1484, 93
        %v1510 = vpop.permute.xlu0 %1509
        %1511 = vrot.lane.b32.xlu0 %v1485, 93
        %v1512 = vpop.permute.xlu0 %1511
        %1513 = vrot.lane.b32.xlu0 %v1486, 93
        %v1514 = vpop.permute.xlu0 %1513
        %1515 = vrot.lane.b32.xlu0 %v1487, 93
        %v1516 = vpop.permute.xlu0 %1515
        %1517 = vrot.lane.b32.xlu0 %v1488, 93
        %v1518 = vpop.permute.xlu0 %1517
        %v1519 = vsel %vm1376, %v1500, %v1502
        %v1520 = vsel %vm1376, %v1502, %v1504
        %v1521 = vsel %vm1376, %v1504, %v1506
        %v1522 = vsel %vm1376, %v1506, %v1508
        %v1523 = vsel %vm1376, %v1508, %v1510
        %v1524 = vsel %vm1376, %v1510, %v1512
        %v1525 = vsel %vm1376, %v1512, %v1514
        %v1526 = vsel %vm1376, %v1514, %v1516
        %v1527 = vsel %vm1376, %v1516, %v1518
        %v1537 = vadd.f32 %v1466, %v1519
        %v1538 = vadd.f32 %v1467, %v1520
        %v1539 = vadd.f32 %v1468, %v1521
        %v1540 = vadd.f32 %v1469, %v1522
        %v1541 = vadd.f32 %v1470, %v1523
        %v1542 = vadd.f32 %v1471, %v1524
        %v1543 = vadd.f32 %v1472, %v1525
        %v1544 = vadd.f32 %v1473, %v1526
        %v1545 = vadd.f32 %v1474, %v1527
        %1546 = vset.pattern.permute.xlu0 19
        %1547 = vperm.xlu0 %1546, %v192
        %v1548 = vpop.permute.xlu0 %1547
        %v1550 = vmul.f32 %v1548, %v675
        %v1551 = vmul.f32 %v1548, %v676
        %v1552 = vmul.f32 %v1548, %v677
        %v1553 = vmul.f32 %v1548, %v678
        %v1554 = vmul.f32 %v1548, %v679
        %v1555 = vmul.f32 %v1548, %v680
        %v1556 = vmul.f32 %v1548, %v681
        %v1557 = vmul.f32 %v1548, %v682
        %v1558 = vmul.f32 %v1548, %v683
        %v1559 = vmul.f32 %v1548, %v684
        %1570 = vrot.lane.b32.xlu0 %v1550, 93
        %v1571 = vpop.permute.xlu0 %1570
        %1572 = vrot.lane.b32.xlu0 %v1551, 93
        %v1573 = vpop.permute.xlu0 %1572
        %1574 = vrot.lane.b32.xlu0 %v1552, 93
        %v1575 = vpop.permute.xlu0 %1574
        %1576 = vrot.lane.b32.xlu0 %v1553, 93
        %v1577 = vpop.permute.xlu0 %1576
        %1578 = vrot.lane.b32.xlu0 %v1554, 93
        %v1579 = vpop.permute.xlu0 %1578
        %1580 = vrot.lane.b32.xlu0 %v1555, 93
        %v1581 = vpop.permute.xlu0 %1580
        %1582 = vrot.lane.b32.xlu0 %v1556, 93
        %v1583 = vpop.permute.xlu0 %1582
        %1584 = vrot.lane.b32.xlu0 %v1557, 93
        %v1585 = vpop.permute.xlu0 %1584
        %1586 = vrot.lane.b32.xlu0 %v1558, 93
        %v1587 = vpop.permute.xlu0 %1586
        %1588 = vrot.lane.b32.xlu0 %v1559, 93
        %v1589 = vpop.permute.xlu0 %1588
        %v1590 = vsel %vm1376, %v1571, %v1573
        %v1591 = vsel %vm1376, %v1573, %v1575
        %v1592 = vsel %vm1376, %v1575, %v1577
        %v1593 = vsel %vm1376, %v1577, %v1579
        %v1594 = vsel %vm1376, %v1579, %v1581
        %v1595 = vsel %vm1376, %v1581, %v1583
        %v1596 = vsel %vm1376, %v1583, %v1585
        %v1597 = vsel %vm1376, %v1585, %v1587
        %v1598 = vsel %vm1376, %v1587, %v1589
        %v1608 = vadd.f32 %v1537, %v1590
        %v1609 = vadd.f32 %v1538, %v1591
        %v1610 = vadd.f32 %v1539, %v1592
        %v1611 = vadd.f32 %v1540, %v1593
        %v1612 = vadd.f32 %v1541, %v1594
        %v1613 = vadd.f32 %v1542, %v1595
        %v1614 = vadd.f32 %v1543, %v1596
        %v1615 = vadd.f32 %v1544, %v1597
        %v1616 = vadd.f32 %v1545, %v1598
        %1617 = vset.pattern.permute.xlu0 20
        %1618 = vperm.xlu0 %1617, %v192
        %v1619 = vpop.permute.xlu0 %1618
        %v1621 = vmul.f32 %v1619, %v383
        %v1622 = vmul.f32 %v1619, %v384
        %v1623 = vmul.f32 %v1619, %v385
        %v1624 = vmul.f32 %v1619, %v386
        %v1625 = vmul.f32 %v1619, %v387
        %v1626 = vmul.f32 %v1619, %v388
        %v1627 = vmul.f32 %v1619, %v389
        %v1628 = vmul.f32 %v1619, %v390
        %v1629 = vmul.f32 %v1619, %v391
        %v1630 = vmul.f32 %v1619, %v392
        %1641 = vrot.lane.b32.xlu0 %v1621, 92
        %v1642 = vpop.permute.xlu0 %1641
        %1643 = vrot.lane.b32.xlu0 %v1622, 92
        %v1644 = vpop.permute.xlu0 %1643
        %1645 = vrot.lane.b32.xlu0 %v1623, 92
        %v1646 = vpop.permute.xlu0 %1645
        %1647 = vrot.lane.b32.xlu0 %v1624, 92
        %v1648 = vpop.permute.xlu0 %1647
        %1649 = vrot.lane.b32.xlu0 %v1625, 92
        %v1650 = vpop.permute.xlu0 %1649
        %1651 = vrot.lane.b32.xlu0 %v1626, 92
        %v1652 = vpop.permute.xlu0 %1651
        %1653 = vrot.lane.b32.xlu0 %v1627, 92
        %v1654 = vpop.permute.xlu0 %1653
        %1655 = vrot.lane.b32.xlu0 %v1628, 92
        %v1656 = vpop.permute.xlu0 %1655
        %1657 = vrot.lane.b32.xlu0 %v1629, 92
        %v1658 = vpop.permute.xlu0 %1657
        %1659 = vrot.lane.b32.xlu0 %v1630, 92
        %v1660 = vpop.permute.xlu0 %1659
        %vm1661 = vcmask 752640
        %v1662 = vsel %vm1661, %v1642, %v1644
        %v1663 = vsel %vm1661, %v1644, %v1646
        %v1664 = vsel %vm1661, %v1646, %v1648
        %v1665 = vsel %vm1661, %v1648, %v1650
        %v1666 = vsel %vm1661, %v1650, %v1652
        %v1667 = vsel %vm1661, %v1652, %v1654
        %v1668 = vsel %vm1661, %v1654, %v1656
        %v1669 = vsel %vm1661, %v1656, %v1658
        %v1670 = vsel %vm1661, %v1658, %v1660
        %v1680 = vadd.f32 %v1608, %v1662
        %v1681 = vadd.f32 %v1609, %v1663
        %v1682 = vadd.f32 %v1610, %v1664
        %v1683 = vadd.f32 %v1611, %v1665
        %v1684 = vadd.f32 %v1612, %v1666
        %v1685 = vadd.f32 %v1613, %v1667
        %v1686 = vadd.f32 %v1614, %v1668
        %v1687 = vadd.f32 %v1615, %v1669
        %v1688 = vadd.f32 %v1616, %v1670
        %1689 = vset.pattern.permute.xlu0 21
        %1690 = vperm.xlu0 %1689, %v192
        %v1691 = vpop.permute.xlu0 %1690
        %v1693 = vmul.f32 %v1691, %v481
        %v1694 = vmul.f32 %v1691, %v482
        %v1695 = vmul.f32 %v1691, %v483
        %v1696 = vmul.f32 %v1691, %v484
        %v1697 = vmul.f32 %v1691, %v485
        %v1698 = vmul.f32 %v1691, %v486
        %v1699 = vmul.f32 %v1691, %v487
        %v1700 = vmul.f32 %v1691, %v488
        %v1701 = vmul.f32 %v1691, %v489
        %v1702 = vmul.f32 %v1691, %v490
        %1713 = vrot.lane.b32.xlu0 %v1693, 92
        %v1714 = vpop.permute.xlu0 %1713
        %1715 = vrot.lane.b32.xlu0 %v1694, 92
        %v1716 = vpop.permute.xlu0 %1715
        %1717 = vrot.lane.b32.xlu0 %v1695, 92
        %v1718 = vpop.permute.xlu0 %1717
        %1719 = vrot.lane.b32.xlu0 %v1696, 92
        %v1720 = vpop.permute.xlu0 %1719
        %1721 = vrot.lane.b32.xlu0 %v1697, 92
        %v1722 = vpop.permute.xlu0 %1721
        %1723 = vrot.lane.b32.xlu0 %v1698, 92
        %v1724 = vpop.permute.xlu0 %1723
        %1725 = vrot.lane.b32.xlu0 %v1699, 92
        %v1726 = vpop.permute.xlu0 %1725
        %1727 = vrot.lane.b32.xlu0 %v1700, 92
        %v1728 = vpop.permute.xlu0 %1727
        %1729 = vrot.lane.b32.xlu0 %v1701, 92
        %v1730 = vpop.permute.xlu0 %1729
        %1731 = vrot.lane.b32.xlu0 %v1702, 92
        %v1732 = vpop.permute.xlu0 %1731
        %v1733 = vsel %vm1661, %v1714, %v1716
        %v1734 = vsel %vm1661, %v1716, %v1718
        %v1735 = vsel %vm1661, %v1718, %v1720
        %v1736 = vsel %vm1661, %v1720, %v1722
        %v1737 = vsel %vm1661, %v1722, %v1724
        %v1738 = vsel %vm1661, %v1724, %v1726
        %v1739 = vsel %vm1661, %v1726, %v1728
        %v1740 = vsel %vm1661, %v1728, %v1730
        %v1741 = vsel %vm1661, %v1730, %v1732
        %v1751 = vadd.f32 %v1680, %v1733
        %v1752 = vadd.f32 %v1681, %v1734
        %v1753 = vadd.f32 %v1682, %v1735
        %v1754 = vadd.f32 %v1683, %v1736
        %v1755 = vadd.f32 %v1684, %v1737
        %v1756 = vadd.f32 %v1685, %v1738
        %v1757 = vadd.f32 %v1686, %v1739
        %v1758 = vadd.f32 %v1687, %v1740
        %v1759 = vadd.f32 %v1688, %v1741
        %1760 = vset.pattern.permute.xlu0 22
        %1761 = vperm.xlu0 %1760, %v192
        %v1762 = vpop.permute.xlu0 %1761
        %v1764 = vmul.f32 %v1762, %v578
        %v1765 = vmul.f32 %v1762, %v579
        %v1766 = vmul.f32 %v1762, %v580
        %v1767 = vmul.f32 %v1762, %v581
        %v1768 = vmul.f32 %v1762, %v582
        %v1769 = vmul.f32 %v1762, %v583
        %v1770 = vmul.f32 %v1762, %v584
        %v1771 = vmul.f32 %v1762, %v585
        %v1772 = vmul.f32 %v1762, %v586
        %v1773 = vmul.f32 %v1762, %v587
        %1784 = vrot.lane.b32.xlu0 %v1764, 92
        %v1785 = vpop.permute.xlu0 %1784
        %1786 = vrot.lane.b32.xlu0 %v1765, 92
        %v1787 = vpop.permute.xlu0 %1786
        %1788 = vrot.lane.b32.xlu0 %v1766, 92
        %v1789 = vpop.permute.xlu0 %1788
        %1790 = vrot.lane.b32.xlu0 %v1767, 92
        %v1791 = vpop.permute.xlu0 %1790
        %1792 = vrot.lane.b32.xlu0 %v1768, 92
        %v1793 = vpop.permute.xlu0 %1792
        %1794 = vrot.lane.b32.xlu0 %v1769, 92
        %v1795 = vpop.permute.xlu0 %1794
        %1796 = vrot.lane.b32.xlu0 %v1770, 92
        %v1797 = vpop.permute.xlu0 %1796
        %1798 = vrot.lane.b32.xlu0 %v1771, 92
        %v1799 = vpop.permute.xlu0 %1798
        %1800 = vrot.lane.b32.xlu0 %v1772, 92
        %v1801 = vpop.permute.xlu0 %1800
        %1802 = vrot.lane.b32.xlu0 %v1773, 92
        %v1803 = vpop.permute.xlu0 %1802
        %v1804 = vsel %vm1661, %v1785, %v1787
        %v1805 = vsel %vm1661, %v1787, %v1789
        %v1806 = vsel %vm1661, %v1789, %v1791
        %v1807 = vsel %vm1661, %v1791, %v1793
        %v1808 = vsel %vm1661, %v1793, %v1795
        %v1809 = vsel %vm1661, %v1795, %v1797
        %v1810 = vsel %vm1661, %v1797, %v1799
        %v1811 = vsel %vm1661, %v1799, %v1801
        %v1812 = vsel %vm1661, %v1801, %v1803
        %v1822 = vadd.f32 %v1751, %v1804
        %v1823 = vadd.f32 %v1752, %v1805
        %v1824 = vadd.f32 %v1753, %v1806
        %v1825 = vadd.f32 %v1754, %v1807
        %v1826 = vadd.f32 %v1755, %v1808
        %v1827 = vadd.f32 %v1756, %v1809
        %v1828 = vadd.f32 %v1757, %v1810
        %v1829 = vadd.f32 %v1758, %v1811
        %v1830 = vadd.f32 %v1759, %v1812
        %1831 = vset.pattern.permute.xlu0 23
        %1832 = vperm.xlu0 %1831, %v192
        %v1833 = vpop.permute.xlu0 %1832
        %v1835 = vmul.f32 %v1833, %v675
        %v1836 = vmul.f32 %v1833, %v676
        %v1837 = vmul.f32 %v1833, %v677
        %v1838 = vmul.f32 %v1833, %v678
        %v1839 = vmul.f32 %v1833, %v679
        %v1840 = vmul.f32 %v1833, %v680
        %v1841 = vmul.f32 %v1833, %v681
        %v1842 = vmul.f32 %v1833, %v682
        %v1843 = vmul.f32 %v1833, %v683
        %v1844 = vmul.f32 %v1833, %v684
        %1855 = vrot.lane.b32.xlu0 %v1835, 92
        %v1856 = vpop.permute.xlu0 %1855
        %1857 = vrot.lane.b32.xlu0 %v1836, 92
        %v1858 = vpop.permute.xlu0 %1857
        %1859 = vrot.lane.b32.xlu0 %v1837, 92
        %v1860 = vpop.permute.xlu0 %1859
        %1861 = vrot.lane.b32.xlu0 %v1838, 92
        %v1862 = vpop.permute.xlu0 %1861
        %1863 = vrot.lane.b32.xlu0 %v1839, 92
        %v1864 = vpop.permute.xlu0 %1863
        %1865 = vrot.lane.b32.xlu0 %v1840, 92
        %v1866 = vpop.permute.xlu0 %1865
        %1867 = vrot.lane.b32.xlu0 %v1841, 92
        %v1868 = vpop.permute.xlu0 %1867
        %1869 = vrot.lane.b32.xlu0 %v1842, 92
        %v1870 = vpop.permute.xlu0 %1869
        %1871 = vrot.lane.b32.xlu0 %v1843, 92
        %v1872 = vpop.permute.xlu0 %1871
        %1873 = vrot.lane.b32.xlu0 %v1844, 92
        %v1874 = vpop.permute.xlu0 %1873
        %v1875 = vsel %vm1661, %v1856, %v1858
        %v1876 = vsel %vm1661, %v1858, %v1860
        %v1877 = vsel %vm1661, %v1860, %v1862
        %v1878 = vsel %vm1661, %v1862, %v1864
        %v1879 = vsel %vm1661, %v1864, %v1866
        %v1880 = vsel %vm1661, %v1866, %v1868
        %v1881 = vsel %vm1661, %v1868, %v1870
        %v1882 = vsel %vm1661, %v1870, %v1872
        %v1883 = vsel %vm1661, %v1872, %v1874
        %v1893 = vadd.f32 %v1822, %v1875
        %v1894 = vadd.f32 %v1823, %v1876
        %v1895 = vadd.f32 %v1824, %v1877
        %v1896 = vadd.f32 %v1825, %v1878
        %v1897 = vadd.f32 %v1826, %v1879
        %v1898 = vadd.f32 %v1827, %v1880
        %v1899 = vadd.f32 %v1828, %v1881
        %v1900 = vadd.f32 %v1829, %v1882
        %v1901 = vadd.f32 %v1830, %v1883
        %1902 = vset.pattern.permute.xlu0 24
        %1903 = vperm.xlu0 %1902, %v192
        %v1904 = vpop.permute.xlu0 %1903
        %v1906 = vmul.f32 %v1904, %v383
        %v1907 = vmul.f32 %v1904, %v384
        %v1908 = vmul.f32 %v1904, %v385
        %v1909 = vmul.f32 %v1904, %v386
        %v1910 = vmul.f32 %v1904, %v387
        %v1911 = vmul.f32 %v1904, %v388
        %v1912 = vmul.f32 %v1904, %v389
        %v1913 = vmul.f32 %v1904, %v390
        %v1914 = vmul.f32 %v1904, %v391
        %v1915 = vmul.f32 %v1904, %v392
        %1926 = vrot.lane.b32.xlu0 %v1906, 60
        %v1927 = vpop.permute.xlu0 %1926
        %1928 = vrot.lane.b32.xlu0 %v1907, 60
        %v1929 = vpop.permute.xlu0 %1928
        %1930 = vrot.lane.b32.xlu0 %v1908, 60
        %v1931 = vpop.permute.xlu0 %1930
        %1932 = vrot.lane.b32.xlu0 %v1909, 60
        %v1933 = vpop.permute.xlu0 %1932
        %1934 = vrot.lane.b32.xlu0 %v1910, 60
        %v1935 = vpop.permute.xlu0 %1934
        %1936 = vrot.lane.b32.xlu0 %v1911, 60
        %v1937 = vpop.permute.xlu0 %1936
        %1938 = vrot.lane.b32.xlu0 %v1912, 60
        %v1939 = vpop.permute.xlu0 %1938
        %1940 = vrot.lane.b32.xlu0 %v1913, 60
        %v1941 = vpop.permute.xlu0 %1940
        %1942 = vrot.lane.b32.xlu0 %v1914, 60
        %v1943 = vpop.permute.xlu0 %1942
        %1944 = vrot.lane.b32.xlu0 %v1915, 60
        %v1945 = vpop.permute.xlu0 %1944
        %vm1946 = vcmask 490496
        %v1947 = vsel %vm1946, %v1927, %v1929
        %v1948 = vsel %vm1946, %v1929, %v1931
        %v1949 = vsel %vm1946, %v1931, %v1933
        %v1950 = vsel %vm1946, %v1933, %v1935
        %v1951 = vsel %vm1946, %v1935, %v1937
        %v1952 = vsel %vm1946, %v1937, %v1939
        %v1953 = vsel %vm1946, %v1939, %v1941
        %v1954 = vsel %vm1946, %v1941, %v1943
        %v1955 = vsel %vm1946, %v1943, %v1945
        %v1965 = vadd.f32 %v1893, %v1947
        %v1966 = vadd.f32 %v1894, %v1948
        %v1967 = vadd.f32 %v1895, %v1949
        %v1968 = vadd.f32 %v1896, %v1950
        %v1969 = vadd.f32 %v1897, %v1951
        %v1970 = vadd.f32 %v1898, %v1952
        %v1971 = vadd.f32 %v1899, %v1953
        %v1972 = vadd.f32 %v1900, %v1954
        %v1973 = vadd.f32 %v1901, %v1955
        %1974 = vset.pattern.permute.xlu0 25
        %1975 = vperm.xlu0 %1974, %v192
        %v1976 = vpop.permute.xlu0 %1975
        %v1978 = vmul.f32 %v1976, %v481
        %v1979 = vmul.f32 %v1976, %v482
        %v1980 = vmul.f32 %v1976, %v483
        %v1981 = vmul.f32 %v1976, %v484
        %v1982 = vmul.f32 %v1976, %v485
        %v1983 = vmul.f32 %v1976, %v486
        %v1984 = vmul.f32 %v1976, %v487
        %v1985 = vmul.f32 %v1976, %v488
        %v1986 = vmul.f32 %v1976, %v489
        %v1987 = vmul.f32 %v1976, %v490
        %1998 = vrot.lane.b32.xlu0 %v1978, 60
        %v1999 = vpop.permute.xlu0 %1998
        %2000 = vrot.lane.b32.xlu0 %v1979, 60
        %v2001 = vpop.permute.xlu0 %2000
        %2002 = vrot.lane.b32.xlu0 %v1980, 60
        %v2003 = vpop.permute.xlu0 %2002
        %2004 = vrot.lane.b32.xlu0 %v1981, 60
        %v2005 = vpop.permute.xlu0 %2004
        %2006 = vrot.lane.b32.xlu0 %v1982, 60
        %v2007 = vpop.permute.xlu0 %2006
        %2008 = vrot.lane.b32.xlu0 %v1983, 60
        %v2009 = vpop.permute.xlu0 %2008
        %2010 = vrot.lane.b32.xlu0 %v1984, 60
        %v2011 = vpop.permute.xlu0 %2010
        %2012 = vrot.lane.b32.xlu0 %v1985, 60
        %v2013 = vpop.permute.xlu0 %2012
        %2014 = vrot.lane.b32.xlu0 %v1986, 60
        %v2015 = vpop.permute.xlu0 %2014
        %2016 = vrot.lane.b32.xlu0 %v1987, 60
        %v2017 = vpop.permute.xlu0 %2016
        %v2018 = vsel %vm1946, %v1999, %v2001
        %v2019 = vsel %vm1946, %v2001, %v2003
        %v2020 = vsel %vm1946, %v2003, %v2005
        %v2021 = vsel %vm1946, %v2005, %v2007
        %v2022 = vsel %vm1946, %v2007, %v2009
        %v2023 = vsel %vm1946, %v2009, %v2011
        %v2024 = vsel %vm1946, %v2011, %v2013
        %v2025 = vsel %vm1946, %v2013, %v2015
        %v2026 = vsel %vm1946, %v2015, %v2017
        %v2036 = vadd.f32 %v1965, %v2018
        %v2037 = vadd.f32 %v1966, %v2019
        %v2038 = vadd.f32 %v1967, %v2020
        %v2039 = vadd.f32 %v1968, %v2021
        %v2040 = vadd.f32 %v1969, %v2022
        %v2041 = vadd.f32 %v1970, %v2023
        %v2042 = vadd.f32 %v1971, %v2024
        %v2043 = vadd.f32 %v1972, %v2025
        %v2044 = vadd.f32 %v1973, %v2026
        %2045 = vset.pattern.permute.xlu0 26
        %2046 = vperm.xlu0 %2045, %v192
        %v2047 = vpop.permute.xlu0 %2046
        %v2049 = vmul.f32 %v2047, %v578
        %v2050 = vmul.f32 %v2047, %v579
        %v2051 = vmul.f32 %v2047, %v580
        %v2052 = vmul.f32 %v2047, %v581
        %v2053 = vmul.f32 %v2047, %v582
        %v2054 = vmul.f32 %v2047, %v583
        %v2055 = vmul.f32 %v2047, %v584
        %v2056 = vmul.f32 %v2047, %v585
        %v2057 = vmul.f32 %v2047, %v586
        %v2058 = vmul.f32 %v2047, %v587
        %2069 = vrot.lane.b32.xlu0 %v2049, 60
        %v2070 = vpop.permute.xlu0 %2069
        %2071 = vrot.lane.b32.xlu0 %v2050, 60
        %v2072 = vpop.permute.xlu0 %2071
        %2073 = vrot.lane.b32.xlu0 %v2051, 60
        %v2074 = vpop.permute.xlu0 %2073
        %2075 = vrot.lane.b32.xlu0 %v2052, 60
        %v2076 = vpop.permute.xlu0 %2075
        %2077 = vrot.lane.b32.xlu0 %v2053, 60
        %v2078 = vpop.permute.xlu0 %2077
        %2079 = vrot.lane.b32.xlu0 %v2054, 60
        %v2080 = vpop.permute.xlu0 %2079
        %2081 = vrot.lane.b32.xlu0 %v2055, 60
        %v2082 = vpop.permute.xlu0 %2081
        %2083 = vrot.lane.b32.xlu0 %v2056, 60
        %v2084 = vpop.permute.xlu0 %2083
        %2085 = vrot.lane.b32.xlu0 %v2057, 60
        %v2086 = vpop.permute.xlu0 %2085
        %2087 = vrot.lane.b32.xlu0 %v2058, 60
        %v2088 = vpop.permute.xlu0 %2087
        %v2089 = vsel %vm1946, %v2070, %v2072
        %v2090 = vsel %vm1946, %v2072, %v2074
        %v2091 = vsel %vm1946, %v2074, %v2076
        %v2092 = vsel %vm1946, %v2076, %v2078
        %v2093 = vsel %vm1946, %v2078, %v2080
        %v2094 = vsel %vm1946, %v2080, %v2082
        %v2095 = vsel %vm1946, %v2082, %v2084
        %v2096 = vsel %vm1946, %v2084, %v2086
        %v2097 = vsel %vm1946, %v2086, %v2088
        %v2107 = vadd.f32 %v2036, %v2089
        %v2108 = vadd.f32 %v2037, %v2090
        %v2109 = vadd.f32 %v2038, %v2091
        %v2110 = vadd.f32 %v2039, %v2092
        %v2111 = vadd.f32 %v2040, %v2093
        %v2112 = vadd.f32 %v2041, %v2094
        %v2113 = vadd.f32 %v2042, %v2095
        %v2114 = vadd.f32 %v2043, %v2096
        %v2115 = vadd.f32 %v2044, %v2097
        %2116 = vset.pattern.permute.xlu0 27
        %2117 = vperm.xlu0 %2116, %v192
        %v2118 = vpop.permute.xlu0 %2117
        %v2120 = vmul.f32 %v2118, %v675
        %v2121 = vmul.f32 %v2118, %v676
        %v2122 = vmul.f32 %v2118, %v677
        %v2123 = vmul.f32 %v2118, %v678
        %v2124 = vmul.f32 %v2118, %v679
        %v2125 = vmul.f32 %v2118, %v680
        %v2126 = vmul.f32 %v2118, %v681
        %v2127 = vmul.f32 %v2118, %v682
        %v2128 = vmul.f32 %v2118, %v683
        %v2129 = vmul.f32 %v2118, %v684
        %2140 = vrot.lane.b32.xlu0 %v2120, 60
        %v2141 = vpop.permute.xlu0 %2140
        %2142 = vrot.lane.b32.xlu0 %v2121, 60
        %v2143 = vpop.permute.xlu0 %2142
        %2144 = vrot.lane.b32.xlu0 %v2122, 60
        %v2145 = vpop.permute.xlu0 %2144
        %2146 = vrot.lane.b32.xlu0 %v2123, 60
        %v2147 = vpop.permute.xlu0 %2146
        %2148 = vrot.lane.b32.xlu0 %v2124, 60
        %v2149 = vpop.permute.xlu0 %2148
        %2150 = vrot.lane.b32.xlu0 %v2125, 60
        %v2151 = vpop.permute.xlu0 %2150
        %2152 = vrot.lane.b32.xlu0 %v2126, 60
        %v2153 = vpop.permute.xlu0 %2152
        %2154 = vrot.lane.b32.xlu0 %v2127, 60
        %v2155 = vpop.permute.xlu0 %2154
        %2156 = vrot.lane.b32.xlu0 %v2128, 60
        %v2157 = vpop.permute.xlu0 %2156
        %2158 = vrot.lane.b32.xlu0 %v2129, 60
        %v2159 = vpop.permute.xlu0 %2158
        %v2160 = vsel %vm1946, %v2141, %v2143
        %v2161 = vsel %vm1946, %v2143, %v2145
        %v2162 = vsel %vm1946, %v2145, %v2147
        %v2163 = vsel %vm1946, %v2147, %v2149
        %v2164 = vsel %vm1946, %v2149, %v2151
        %v2165 = vsel %vm1946, %v2151, %v2153
        %v2166 = vsel %vm1946, %v2153, %v2155
        %v2167 = vsel %vm1946, %v2155, %v2157
        %v2168 = vsel %vm1946, %v2157, %v2159
        %v2178 = vadd.f32 %v2107, %v2160
        %v2179 = vadd.f32 %v2108, %v2161
        %v2180 = vadd.f32 %v2109, %v2162
        %v2181 = vadd.f32 %v2110, %v2163
        %v2182 = vadd.f32 %v2111, %v2164
        %v2183 = vadd.f32 %v2112, %v2165
        %v2184 = vadd.f32 %v2113, %v2166
        %v2185 = vadd.f32 %v2114, %v2167
        %v2186 = vadd.f32 %v2115, %v2168
        %2187 = vset.pattern.permute.xlu0 28
        %2188 = vperm.xlu0 %2187, %v192
        %v2189 = vpop.permute.xlu0 %2188
        %v2191 = vmul.f32 %v2189, %v383
        %v2192 = vmul.f32 %v2189, %v384
        %v2193 = vmul.f32 %v2189, %v385
        %v2194 = vmul.f32 %v2189, %v386
        %v2195 = vmul.f32 %v2189, %v387
        %v2196 = vmul.f32 %v2189, %v388
        %v2197 = vmul.f32 %v2189, %v389
        %v2198 = vmul.f32 %v2189, %v390
        %v2199 = vmul.f32 %v2189, %v391
        %v2200 = vmul.f32 %v2189, %v392
        %2211 = vrot.lane.b32.xlu0 %v2191, 59
        %v2212 = vpop.permute.xlu0 %2211
        %2213 = vrot.lane.b32.xlu0 %v2192, 59
        %v2214 = vpop.permute.xlu0 %2213
        %2215 = vrot.lane.b32.xlu0 %v2193, 59
        %v2216 = vpop.permute.xlu0 %2215
        %2217 = vrot.lane.b32.xlu0 %v2194, 59
        %v2218 = vpop.permute.xlu0 %2217
        %2219 = vrot.lane.b32.xlu0 %v2195, 59
        %v2220 = vpop.permute.xlu0 %2219
        %2221 = vrot.lane.b32.xlu0 %v2196, 59
        %v2222 = vpop.permute.xlu0 %2221
        %2223 = vrot.lane.b32.xlu0 %v2197, 59
        %v2224 = vpop.permute.xlu0 %2223
        %2225 = vrot.lane.b32.xlu0 %v2198, 59
        %v2226 = vpop.permute.xlu0 %2225
        %2227 = vrot.lane.b32.xlu0 %v2199, 59
        %v2228 = vpop.permute.xlu0 %2227
        %2229 = vrot.lane.b32.xlu0 %v2200, 59
        %v2230 = vpop.permute.xlu0 %2229
        %vm2231 = vcmask 482304
        %v2232 = vsel %vm2231, %v2212, %v2214
        %v2233 = vsel %vm2231, %v2214, %v2216
        %v2234 = vsel %vm2231, %v2216, %v2218
        %v2235 = vsel %vm2231, %v2218, %v2220
        %v2236 = vsel %vm2231, %v2220, %v2222
        %v2237 = vsel %vm2231, %v2222, %v2224
        %v2238 = vsel %vm2231, %v2224, %v2226
        %v2239 = vsel %vm2231, %v2226, %v2228
        %v2240 = vsel %vm2231, %v2228, %v2230
        %v2250 = vadd.f32 %v2178, %v2232
        %v2251 = vadd.f32 %v2179, %v2233
        %v2252 = vadd.f32 %v2180, %v2234
        %v2253 = vadd.f32 %v2181, %v2235
        %v2254 = vadd.f32 %v2182, %v2236
        %v2255 = vadd.f32 %v2183, %v2237
        %v2256 = vadd.f32 %v2184, %v2238
        %v2257 = vadd.f32 %v2185, %v2239
        %v2258 = vadd.f32 %v2186, %v2240
        %2259 = vset.pattern.permute.xlu0 29
        %2260 = vperm.xlu0 %2259, %v192
        %v2261 = vpop.permute.xlu0 %2260
        %v2263 = vmul.f32 %v2261, %v481
        %v2264 = vmul.f32 %v2261, %v482
        %v2265 = vmul.f32 %v2261, %v483
        %v2266 = vmul.f32 %v2261, %v484
        %v2267 = vmul.f32 %v2261, %v485
        %v2268 = vmul.f32 %v2261, %v486
        %v2269 = vmul.f32 %v2261, %v487
        %v2270 = vmul.f32 %v2261, %v488
        %v2271 = vmul.f32 %v2261, %v489
        %v2272 = vmul.f32 %v2261, %v490
        %2283 = vrot.lane.b32.xlu0 %v2263, 59
        %v2284 = vpop.permute.xlu0 %2283
        %2285 = vrot.lane.b32.xlu0 %v2264, 59
        %v2286 = vpop.permute.xlu0 %2285
        %2287 = vrot.lane.b32.xlu0 %v2265, 59
        %v2288 = vpop.permute.xlu0 %2287
        %2289 = vrot.lane.b32.xlu0 %v2266, 59
        %v2290 = vpop.permute.xlu0 %2289
        %2291 = vrot.lane.b32.xlu0 %v2267, 59
        %v2292 = vpop.permute.xlu0 %2291
        %2293 = vrot.lane.b32.xlu0 %v2268, 59
        %v2294 = vpop.permute.xlu0 %2293
        %2295 = vrot.lane.b32.xlu0 %v2269, 59
        %v2296 = vpop.permute.xlu0 %2295
        %2297 = vrot.lane.b32.xlu0 %v2270, 59
        %v2298 = vpop.permute.xlu0 %2297
        %2299 = vrot.lane.b32.xlu0 %v2271, 59
        %v2300 = vpop.permute.xlu0 %2299
        %2301 = vrot.lane.b32.xlu0 %v2272, 59
        %v2302 = vpop.permute.xlu0 %2301
        %v2303 = vsel %vm2231, %v2284, %v2286
        %v2304 = vsel %vm2231, %v2286, %v2288
        %v2305 = vsel %vm2231, %v2288, %v2290
        %v2306 = vsel %vm2231, %v2290, %v2292
        %v2307 = vsel %vm2231, %v2292, %v2294
        %v2308 = vsel %vm2231, %v2294, %v2296
        %v2309 = vsel %vm2231, %v2296, %v2298
        %v2310 = vsel %vm2231, %v2298, %v2300
        %v2311 = vsel %vm2231, %v2300, %v2302
        %v2321 = vadd.f32 %v2250, %v2303
        %v2322 = vadd.f32 %v2251, %v2304
        %v2323 = vadd.f32 %v2252, %v2305
        %v2324 = vadd.f32 %v2253, %v2306
        %v2325 = vadd.f32 %v2254, %v2307
        %v2326 = vadd.f32 %v2255, %v2308
        %v2327 = vadd.f32 %v2256, %v2309
        %v2328 = vadd.f32 %v2257, %v2310
        %v2329 = vadd.f32 %v2258, %v2311
        %2330 = vset.pattern.permute.xlu0 30
        %2331 = vperm.xlu0 %2330, %v192
        %v2332 = vpop.permute.xlu0 %2331
        %v2334 = vmul.f32 %v2332, %v578
        %v2335 = vmul.f32 %v2332, %v579
        %v2336 = vmul.f32 %v2332, %v580
        %v2337 = vmul.f32 %v2332, %v581
        %v2338 = vmul.f32 %v2332, %v582
        %v2339 = vmul.f32 %v2332, %v583
        %v2340 = vmul.f32 %v2332, %v584
        %v2341 = vmul.f32 %v2332, %v585
        %v2342 = vmul.f32 %v2332, %v586
        %v2343 = vmul.f32 %v2332, %v587
        %2354 = vrot.lane.b32.xlu0 %v2334, 59
        %v2355 = vpop.permute.xlu0 %2354
        %2356 = vrot.lane.b32.xlu0 %v2335, 59
        %v2357 = vpop.permute.xlu0 %2356
        %2358 = vrot.lane.b32.xlu0 %v2336, 59
        %v2359 = vpop.permute.xlu0 %2358
        %2360 = vrot.lane.b32.xlu0 %v2337, 59
        %v2361 = vpop.permute.xlu0 %2360
        %2362 = vrot.lane.b32.xlu0 %v2338, 59
        %v2363 = vpop.permute.xlu0 %2362
        %2364 = vrot.lane.b32.xlu0 %v2339, 59
        %v2365 = vpop.permute.xlu0 %2364
        %2366 = vrot.lane.b32.xlu0 %v2340, 59
        %v2367 = vpop.permute.xlu0 %2366
        %2368 = vrot.lane.b32.xlu0 %v2341, 59
        %v2369 = vpop.permute.xlu0 %2368
        %2370 = vrot.lane.b32.xlu0 %v2342, 59
        %v2371 = vpop.permute.xlu0 %2370
        %2372 = vrot.lane.b32.xlu0 %v2343, 59
        %v2373 = vpop.permute.xlu0 %2372
        %v2374 = vsel %vm2231, %v2355, %v2357
        %v2375 = vsel %vm2231, %v2357, %v2359
        %v2376 = vsel %vm2231, %v2359, %v2361
        %v2377 = vsel %vm2231, %v2361, %v2363
        %v2378 = vsel %vm2231, %v2363, %v2365
        %v2379 = vsel %vm2231, %v2365, %v2367
        %v2380 = vsel %vm2231, %v2367, %v2369
        %v2381 = vsel %vm2231, %v2369, %v2371
        %v2382 = vsel %vm2231, %v2371, %v2373
        %v2392 = vadd.f32 %v2321, %v2374
        %v2393 = vadd.f32 %v2322, %v2375
        %v2394 = vadd.f32 %v2323, %v2376
        %v2395 = vadd.f32 %v2324, %v2377
        %v2396 = vadd.f32 %v2325, %v2378
        %v2397 = vadd.f32 %v2326, %v2379
        %v2398 = vadd.f32 %v2327, %v2380
        %v2399 = vadd.f32 %v2328, %v2381
        %v2400 = vadd.f32 %v2329, %v2382
        %2401 = vset.pattern.permute.xlu0 31
        %2402 = vperm.xlu0 %2401, %v192
        %v2403 = vpop.permute.xlu0 %2402
        %v2405 = vmul.f32 %v2403, %v675
        %v2406 = vmul.f32 %v2403, %v676
        %v2407 = vmul.f32 %v2403, %v677
        %v2408 = vmul.f32 %v2403, %v678
        %v2409 = vmul.f32 %v2403, %v679
        %v2410 = vmul.f32 %v2403, %v680
        %v2411 = vmul.f32 %v2403, %v681
        %v2412 = vmul.f32 %v2403, %v682
        %v2413 = vmul.f32 %v2403, %v683
        %v2414 = vmul.f32 %v2403, %v684
        %2425 = vrot.lane.b32.xlu0 %v2405, 59
        %v2426 = vpop.permute.xlu0 %2425
        %2427 = vrot.lane.b32.xlu0 %v2406, 59
        %v2428 = vpop.permute.xlu0 %2427
        %2429 = vrot.lane.b32.xlu0 %v2407, 59
        %v2430 = vpop.permute.xlu0 %2429
        %2431 = vrot.lane.b32.xlu0 %v2408, 59
        %v2432 = vpop.permute.xlu0 %2431
        %2433 = vrot.lane.b32.xlu0 %v2409, 59
        %v2434 = vpop.permute.xlu0 %2433
        %2435 = vrot.lane.b32.xlu0 %v2410, 59
        %v2436 = vpop.permute.xlu0 %2435
        %2437 = vrot.lane.b32.xlu0 %v2411, 59
        %v2438 = vpop.permute.xlu0 %2437
        %2439 = vrot.lane.b32.xlu0 %v2412, 59
        %v2440 = vpop.permute.xlu0 %2439
        %2441 = vrot.lane.b32.xlu0 %v2413, 59
        %v2442 = vpop.permute.xlu0 %2441
        %2443 = vrot.lane.b32.xlu0 %v2414, 59
        %v2444 = vpop.permute.xlu0 %2443
        %v2445 = vsel %vm2231, %v2426, %v2428
        %v2446 = vsel %vm2231, %v2428, %v2430
        %v2447 = vsel %vm2231, %v2430, %v2432
        %v2448 = vsel %vm2231, %v2432, %v2434
        %v2449 = vsel %vm2231, %v2434, %v2436
        %v2450 = vsel %vm2231, %v2436, %v2438
        %v2451 = vsel %vm2231, %v2438, %v2440
        %v2452 = vsel %vm2231, %v2440, %v2442
        %v2453 = vsel %vm2231, %v2442, %v2444
        %v2463 = vadd.f32 %v2392, %v2445
        %v2464 = vadd.f32 %v2393, %v2446
        %v2465 = vadd.f32 %v2394, %v2447
        %v2466 = vadd.f32 %v2395, %v2448
        %v2467 = vadd.f32 %v2396, %v2449
        %v2468 = vadd.f32 %v2397, %v2450
        %v2469 = vadd.f32 %v2398, %v2451
        %v2470 = vadd.f32 %v2399, %v2452
        %v2471 = vadd.f32 %v2400, %v2453
        %2472 = vset.pattern.permute.xlu0 32
        %2473 = vperm.xlu0 %2472, %v192
        %v2474 = vpop.permute.xlu0 %2473
        %v2476 = vmul.f32 %v2474, %v383
        %v2477 = vmul.f32 %v2474, %v384
        %v2478 = vmul.f32 %v2474, %v385
        %v2479 = vmul.f32 %v2474, %v386
        %v2480 = vmul.f32 %v2474, %v387
        %v2481 = vmul.f32 %v2474, %v388
        %v2482 = vmul.f32 %v2474, %v389
        %v2483 = vmul.f32 %v2474, %v390
        %v2484 = vmul.f32 %v2474, %v391
        %v2485 = vmul.f32 %v2474, %v392
        %2496 = vrot.lane.b32.xlu0 %v2476, 58
        %v2497 = vpop.permute.xlu0 %2496
        %2498 = vrot.lane.b32.xlu0 %v2477, 58
        %v2499 = vpop.permute.xlu0 %2498
        %2500 = vrot.lane.b32.xlu0 %v2478, 58
        %v2501 = vpop.permute.xlu0 %2500
        %2502 = vrot.lane.b32.xlu0 %v2479, 58
        %v2503 = vpop.permute.xlu0 %2502
        %2504 = vrot.lane.b32.xlu0 %v2480, 58
        %v2505 = vpop.permute.xlu0 %2504
        %2506 = vrot.lane.b32.xlu0 %v2481, 58
        %v2507 = vpop.permute.xlu0 %2506
        %2508 = vrot.lane.b32.xlu0 %v2482, 58
        %v2509 = vpop.permute.xlu0 %2508
        %2510 = vrot.lane.b32.xlu0 %v2483, 58
        %v2511 = vpop.permute.xlu0 %2510
        %2512 = vrot.lane.b32.xlu0 %v2484, 58
        %v2513 = vpop.permute.xlu0 %2512
        %2514 = vrot.lane.b32.xlu0 %v2485, 58
        %v2515 = vpop.permute.xlu0 %2514
        %vm2516 = vcmask 474112
        %v2517 = vsel %vm2516, %v2497, %v2499
        %v2518 = vsel %vm2516, %v2499, %v2501
        %v2519 = vsel %vm2516, %v2501, %v2503
        %v2520 = vsel %vm2516, %v2503, %v2505
        %v2521 = vsel %vm2516, %v2505, %v2507
        %v2522 = vsel %vm2516, %v2507, %v2509
        %v2523 = vsel %vm2516, %v2509, %v2511
        %v2524 = vsel %vm2516, %v2511, %v2513
        %v2525 = vsel %vm2516, %v2513, %v2515
        %v2535 = vadd.f32 %v2463, %v2517
        %v2536 = vadd.f32 %v2464, %v2518
        %v2537 = vadd.f32 %v2465, %v2519
        %v2538 = vadd.f32 %v2466, %v2520
        %v2539 = vadd.f32 %v2467, %v2521
        %v2540 = vadd.f32 %v2468, %v2522
        %v2541 = vadd.f32 %v2469, %v2523
        %v2542 = vadd.f32 %v2470, %v2524
        %v2543 = vadd.f32 %v2471, %v2525
        %2544 = vset.pattern.permute.xlu0 33
        %2545 = vperm.xlu0 %2544, %v192
        %v2546 = vpop.permute.xlu0 %2545
        %v2548 = vmul.f32 %v2546, %v481
        %v2549 = vmul.f32 %v2546, %v482
        %v2550 = vmul.f32 %v2546, %v483
        %v2551 = vmul.f32 %v2546, %v484
        %v2552 = vmul.f32 %v2546, %v485
        %v2553 = vmul.f32 %v2546, %v486
        %v2554 = vmul.f32 %v2546, %v487
        %v2555 = vmul.f32 %v2546, %v488
        %v2556 = vmul.f32 %v2546, %v489
        %v2557 = vmul.f32 %v2546, %v490
        %2568 = vrot.lane.b32.xlu0 %v2548, 58
        %v2569 = vpop.permute.xlu0 %2568
        %2570 = vrot.lane.b32.xlu0 %v2549, 58
        %v2571 = vpop.permute.xlu0 %2570
        %2572 = vrot.lane.b32.xlu0 %v2550, 58
        %v2573 = vpop.permute.xlu0 %2572
        %2574 = vrot.lane.b32.xlu0 %v2551, 58
        %v2575 = vpop.permute.xlu0 %2574
        %2576 = vrot.lane.b32.xlu0 %v2552, 58
        %v2577 = vpop.permute.xlu0 %2576
        %2578 = vrot.lane.b32.xlu0 %v2553, 58
        %v2579 = vpop.permute.xlu0 %2578
        %2580 = vrot.lane.b32.xlu0 %v2554, 58
        %v2581 = vpop.permute.xlu0 %2580
        %2582 = vrot.lane.b32.xlu0 %v2555, 58
        %v2583 = vpop.permute.xlu0 %2582
        %2584 = vrot.lane.b32.xlu0 %v2556, 58
        %v2585 = vpop.permute.xlu0 %2584
        %2586 = vrot.lane.b32.xlu0 %v2557, 58
        %v2587 = vpop.permute.xlu0 %2586
        %v2588 = vsel %vm2516, %v2569, %v2571
        %v2589 = vsel %vm2516, %v2571, %v2573
        %v2590 = vsel %vm2516, %v2573, %v2575
        %v2591 = vsel %vm2516, %v2575, %v2577
        %v2592 = vsel %vm2516, %v2577, %v2579
        %v2593 = vsel %vm2516, %v2579, %v2581
        %v2594 = vsel %vm2516, %v2581, %v2583
        %v2595 = vsel %vm2516, %v2583, %v2585
        %v2596 = vsel %vm2516, %v2585, %v2587
        %v2606 = vadd.f32 %v2535, %v2588
        %v2607 = vadd.f32 %v2536, %v2589
        %v2608 = vadd.f32 %v2537, %v2590
        %v2609 = vadd.f32 %v2538, %v2591
        %v2610 = vadd.f32 %v2539, %v2592
        %v2611 = vadd.f32 %v2540, %v2593
        %v2612 = vadd.f32 %v2541, %v2594
        %v2613 = vadd.f32 %v2542, %v2595
        %v2614 = vadd.f32 %v2543, %v2596
        %2615 = vset.pattern.permute.xlu0 34
        %2616 = vperm.xlu0 %2615, %v192
        %v2617 = vpop.permute.xlu0 %2616
        %v2619 = vmul.f32 %v2617, %v578
        %v2620 = vmul.f32 %v2617, %v579
        %v2621 = vmul.f32 %v2617, %v580
        %v2622 = vmul.f32 %v2617, %v581
        %v2623 = vmul.f32 %v2617, %v582
        %v2624 = vmul.f32 %v2617, %v583
        %v2625 = vmul.f32 %v2617, %v584
        %v2626 = vmul.f32 %v2617, %v585
        %v2627 = vmul.f32 %v2617, %v586
        %v2628 = vmul.f32 %v2617, %v587
        %2639 = vrot.lane.b32.xlu0 %v2619, 58
        %v2640 = vpop.permute.xlu0 %2639
        %2641 = vrot.lane.b32.xlu0 %v2620, 58
        %v2642 = vpop.permute.xlu0 %2641
        %2643 = vrot.lane.b32.xlu0 %v2621, 58
        %v2644 = vpop.permute.xlu0 %2643
        %2645 = vrot.lane.b32.xlu0 %v2622, 58
        %v2646 = vpop.permute.xlu0 %2645
        %2647 = vrot.lane.b32.xlu0 %v2623, 58
        %v2648 = vpop.permute.xlu0 %2647
        %2649 = vrot.lane.b32.xlu0 %v2624, 58
        %v2650 = vpop.permute.xlu0 %2649
        %2651 = vrot.lane.b32.xlu0 %v2625, 58
        %v2652 = vpop.permute.xlu0 %2651
        %2653 = vrot.lane.b32.xlu0 %v2626, 58
        %v2654 = vpop.permute.xlu0 %2653
        %2655 = vrot.lane.b32.xlu0 %v2627, 58
        %v2656 = vpop.permute.xlu0 %2655
        %2657 = vrot.lane.b32.xlu0 %v2628, 58
        %v2658 = vpop.permute.xlu0 %2657
        %v2659 = vsel %vm2516, %v2640, %v2642
        %v2660 = vsel %vm2516, %v2642, %v2644
        %v2661 = vsel %vm2516, %v2644, %v2646
        %v2662 = vsel %vm2516, %v2646, %v2648
        %v2663 = vsel %vm2516, %v2648, %v2650
        %v2664 = vsel %vm2516, %v2650, %v2652
        %v2665 = vsel %vm2516, %v2652, %v2654
        %v2666 = vsel %vm2516, %v2654, %v2656
        %v2667 = vsel %vm2516, %v2656, %v2658
        %v2677 = vadd.f32 %v2606, %v2659
        %v2678 = vadd.f32 %v2607, %v2660
        %v2679 = vadd.f32 %v2608, %v2661
        %v2680 = vadd.f32 %v2609, %v2662
        %v2681 = vadd.f32 %v2610, %v2663
        %v2682 = vadd.f32 %v2611, %v2664
        %v2683 = vadd.f32 %v2612, %v2665
        %v2684 = vadd.f32 %v2613, %v2666
        %v2685 = vadd.f32 %v2614, %v2667
        %2686 = vset.pattern.permute.xlu0 35
        %2687 = vperm.xlu0 %2686, %v192
        %v2688 = vpop.permute.xlu0 %2687
        %v2690 = vmul.f32 %v2688, %v675
        %v2691 = vmul.f32 %v2688, %v676
        %v2692 = vmul.f32 %v2688, %v677
        %v2693 = vmul.f32 %v2688, %v678
        %v2694 = vmul.f32 %v2688, %v679
        %v2695 = vmul.f32 %v2688, %v680
        %v2696 = vmul.f32 %v2688, %v681
        %v2697 = vmul.f32 %v2688, %v682
        %v2698 = vmul.f32 %v2688, %v683
        %v2699 = vmul.f32 %v2688, %v684
        %2710 = vrot.lane.b32.xlu0 %v2690, 58
        %v2711 = vpop.permute.xlu0 %2710
        %2712 = vrot.lane.b32.xlu0 %v2691, 58
        %v2713 = vpop.permute.xlu0 %2712
        %2714 = vrot.lane.b32.xlu0 %v2692, 58
        %v2715 = vpop.permute.xlu0 %2714
        %2716 = vrot.lane.b32.xlu0 %v2693, 58
        %v2717 = vpop.permute.xlu0 %2716
        %2718 = vrot.lane.b32.xlu0 %v2694, 58
        %v2719 = vpop.permute.xlu0 %2718
        %2720 = vrot.lane.b32.xlu0 %v2695, 58
        %v2721 = vpop.permute.xlu0 %2720
        %2722 = vrot.lane.b32.xlu0 %v2696, 58
        %v2723 = vpop.permute.xlu0 %2722
        %2724 = vrot.lane.b32.xlu0 %v2697, 58
        %v2725 = vpop.permute.xlu0 %2724
        %2726 = vrot.lane.b32.xlu0 %v2698, 58
        %v2727 = vpop.permute.xlu0 %2726
        %2728 = vrot.lane.b32.xlu0 %v2699, 58
        %v2729 = vpop.permute.xlu0 %2728
        %v2730 = vsel %vm2516, %v2711, %v2713
        %v2731 = vsel %vm2516, %v2713, %v2715
        %v2732 = vsel %vm2516, %v2715, %v2717
        %v2733 = vsel %vm2516, %v2717, %v2719
        %v2734 = vsel %vm2516, %v2719, %v2721
        %v2735 = vsel %vm2516, %v2721, %v2723
        %v2736 = vsel %vm2516, %v2723, %v2725
        %v2737 = vsel %vm2516, %v2725, %v2727
        %v2738 = vsel %vm2516, %v2727, %v2729
        %v2748 = vadd.f32 %v2677, %v2730
        %v2749 = vadd.f32 %v2678, %v2731
        %v2750 = vadd.f32 %v2679, %v2732
        %v2751 = vadd.f32 %v2680, %v2733
        %v2752 = vadd.f32 %v2681, %v2734
        %v2753 = vadd.f32 %v2682, %v2735
        %v2754 = vadd.f32 %v2683, %v2736
        %v2755 = vadd.f32 %v2684, %v2737
        %v2756 = vadd.f32 %v2685, %v2738
        %v2757 = vld [vmem:[%s2] sm:$0xff]
        %2759 = vset.pattern.permute.xlu0 0
        %2760 = vperm.xlu0 %2759, %v2757
        %v2761 = vpop.permute.xlu0 %2760
        %v2763 = vadd.f32 %v2748, %v2761
        %v2764 = vadd.f32 %v2749, %v2761
        %v2765 = vadd.f32 %v2750, %v2761
        %v2766 = vadd.f32 %v2751, %v2761
        %v2767 = vadd.f32 %v2752, %v2761
        %v2768 = vadd.f32 %v2753, %v2761
        %v2769 = vadd.f32 %v2754, %v2761
        %v2770 = vadd.f32 %v2755, %v2761
        %v2771 = vadd.f32 %v2756, %v2761
        %2772 = vst [vmem:[%s188] sm:$0xff] %v2763
        %2773 = vst [vmem:[%s188 + $0x8] sm:$0xff] %v2764
        %2774 = vst [vmem:[%s188 + $0x10] sm:$0xff] %v2765
        %2775 = vst [vmem:[%s188 + $0x18] sm:$0xff] %v2766
        %2776 = vst [vmem:[%s188 + $0x20] sm:$0xff] %v2767
        %2777 = vst [vmem:[%s188 + $0x28] sm:$0xff] %v2768
        %2778 = vst [vmem:[%s188 + $0x30] sm:$0xff] %v2769
        %2779 = vst [vmem:[%s188 + $0x38] sm:$0xff] %v2770
        %2780 = vst [vmem:[%s188 + $0x40] sm:$0xff] %v2771
        %s2781 = sand.u32 %s96, 1
        %s2782 = scalar_lea.sflag [#allocation4], %s2781
        %s2783 = sand.u32 %s96, 1
        %s2784 = smul.addr %s2783, 72
        %s2785 = scalar_lea.vmem [#allocation5], %s2784
        // Predicated region
        $region37: #{tpu_custom_call.1} parent=31 // pred_check
          %p2786 = pneg %p106
        $region38: #{tpu_custom_call.1} parent=31 // pred_check_branch
          %2788 = sbr.rel (%p2786) target = $region40
        $region39: #{tpu_custom_call.1} parent=31 // pred_region
          %2790 = vsyncadd %s2782, 0
          %s2791 = smul.addr %s20, 9
          %s2792 = smul.addr %s2791, 8
          %s2793 = scalar_lea.hbm %s3, %s2792
          %s2795 = sshll.u32 %s2785, 4
          %s2796 = int_to_ptr.vmem [resolvable:$true] %s2795
          %s2797 = sshll.u32 %s2793, 4
          %s2798 = int_to_ptr.hbm [resolvable:$true] %s2797
          %2800 = dma.vmem_to_hbm [thread:$0]  %s2796, 1152, %s2798, %s2782
        $region40: #{tpu_custom_call.1} parent=31 // pred_fallthru
          _
      $region32: #{tpu_custom_call.1} parent=5 // pred_fallthru
        _
      %p2801 = scmp.le.s32.totalorder 2, %s15
      // Predicated region
      $region41: #{tpu_custom_call.1} parent=5 // pred_check
        %p2802 = pneg %p2801
      $region42: #{tpu_custom_call.1} parent=5 // pred_check_branch
        %2804 = sbr.rel (%p2802) target = $region44
      $region43: #{tpu_custom_call.1} parent=5 // pred_region
        %s2805 = ssub.s32 %s15, 2
        // Predicated region
        $region45: #{tpu_custom_call.1} parent=43 // pred_check
          %p2806 = pneg %p112
        $region46: #{tpu_custom_call.1} parent=43 // pred_check_branch
          %2808 = sbr.rel (%p2806) target = $region48
        $region47: #{tpu_custom_call.1} parent=43 // pred_region
          %s2809 = sand.u32 %s97, 1
          %s2810 = scalar_lea.sflag [#allocation4], %s2809
          %s2811 = sand.u32 %s97, 1
          %s2812 = smul.addr %s2811, 72
          %s2813 = scalar_lea.vmem [#allocation5], %s2812
          %2815 = dma.done %s2810, 1152
        $region48: #{tpu_custom_call.1} parent=43 // pred_fallthru
          _
      $region44: #{tpu_custom_call.1} parent=5 // pred_fallthru
        _
    $region6: #{tpu_custom_call.1} parent=1 // loop_footer
      %s19 = sadd.s32 1, %s15
    $region7: #{tpu_custom_call.1} parent=1 // loop_footer_branch
      %14 = sbr.rel target = $region3
    $region8: #{tpu_custom_call.1} parent=1 // loop_exit
      _
    %2816 = vsyncpa [#allocation3], 1
    %s2817 = scalar_lea.sflag [#allocation3], 1
    %2818 = vsyncpa %s2817, 1
    %2819 = vsyncpa [#allocation4], 1
    %s2820 = scalar_lea.sflag [#allocation4], 1
    %2821 = vsyncpa %s2820, 1

</llo_original>
